<compile_context>
chip_gen: v5e
topology: v5e:2x2
jax: 0.10.0
libtpu: 0.0.40
codegen_flags: <defaults>
</compile_context>

<pallas_src>
import functools

import jax
import jax.numpy as jnp
import numpy as np
from jax.experimental import pallas as pl
from jax.experimental.pallas import tpu as pltpu

_NEG_BIG = -1e30  # finite stand-in for -inf in the row-masked softmax


def _detection_head_kernel(
    x_ref,         # (9*Cin, HW)   bf16 : wrapper-side im2col of conv1 input
    w1_ref,        # (Hid, 9*Cin)  bf16
    b1_ref,        # (Hid, 1)      f32
    w2_ref,        # (Hid, 9*Hid)  bf16
    b2_ref,        # (Hid, 1)      f32
    wh_ref,        # (Ctot, Hid)   bf16 : fused [score|box|scale|ctx] weights
    bh_ref,        # (Ctot, 1)     f32
    out_ref,       # (Ctot, HW)    f32  : fused post-activation head outputs
    feat_pad_ref,  # scratch (Hid, HW + 2*PAD) bf16
    im2col_ref,    # scratch (9*Hid, HW)       bf16
    *, H, W, pad, num_scales,
):
    HW = H * W
    PAD = pad                      # multiple of 128, >= W + 1
    Hid = w1_ref.shape[0]
    S = num_scales

    # ---- conv1 (3x3, pad=1) + ReLU : one K = 9*Cin MXU matmul --------------
    feat1 = jnp.dot(w1_ref[...], x_ref[...], preferred_element_type=jnp.float32)
    feat1 = jnp.maximum(feat1 + b1_ref[...], 0.0)

    # Padded (halo) copy of feat1 along the flattened-spatial lane axis.
    # PAD is a multiple of 128 so all three stores are lane-aligned.
    zero_halo = jnp.zeros((Hid, PAD), feat_pad_ref.dtype)
    feat_pad_ref[:, pl.ds(0, PAD)] = zero_halo
    feat_pad_ref[:, pl.ds(PAD + HW, PAD)] = zero_halo
    feat_pad_ref[:, pl.ds(PAD, HW)] = feat1.astype(feat_pad_ref.dtype)

    # ---- build conv2 im2col: 9 taps packed along the contraction dim -------
    fp = feat_pad_ref[...]                                    # (Hid, Lp) bf16
    lane = jax.lax.broadcasted_iota(jnp.int32, (1, fp.shape[1]), 1) % W
    # Masked copies stop the dx=-1 / dx=+1 taps wrapping across image rows
    # (and kill the out-of-bounds corner reads that land back in valid data).
    fp_l = jnp.where(lane != (PAD - 1) % W, fp, jnp.zeros_like(fp))  # dx tap -1
    fp_r = jnp.where(lane != PAD % W, fp, jnp.zeros_like(fp))        # dx tap +1
    srcs = (fp_l, fp, fp_r)
    for dy in range(3):
        for dx in range(3):
            t = dy * 3 + dx
            start = PAD + (dy - 1) * W + (dx - 1)             # static offset
            im2col_ref[pl.ds(t * Hid, Hid), :] = srcs[dx][:, start:start + HW]

    # ---- conv2 (3x3, pad=1) + ReLU : one K = 9*Hid MXU matmul --------------
    feat2 = jnp.dot(w2_ref[...], im2col_ref[...],
                    preferred_element_type=jnp.float32)
    feat2 = jnp.maximum(feat2 + b2_ref[...], 0.0)

    # ---- all four 1x1 heads fused into one matmul --------------------------
    fused = jnp.dot(wh_ref[...], feat2.astype(wh_ref.dtype),
                    preferred_element_type=jnp.float32) + bh_ref[...]

    # Row layout: [0]=score, [1:5]=box, [5:5+S]=scale, [5+S]=context.
    Ctot = out_ref.shape[0]
    row = jax.lax.broadcasted_iota(jnp.int32, (Ctot, HW), 0)
    is_scale = (row >= 5) & (row < 5 + S)
    is_sig = ((row >= 1) & (row < 5)) | (row == 5 + S)

    sig = jax.nn.sigmoid(fused)
    # Softmax over the scale rows only (non-scale rows masked to ~-inf -> 0).
    masked = jnp.where(is_scale, fused, _NEG_BIG)
    m = jnp.max(masked, axis=0, keepdims=True)
    e = jnp.exp(masked - m)
    sm = e * pl.reciprocal(jnp.sum(e, axis=0, keepdims=True), approx=True)

    out_ref[...] = jnp.where(is_scale, sm, jnp.where(is_sig, sig, fused))


def init_params(key, in_dim, hidden_dim, num_scales):
    """Deterministic synthetic parameters (PyTorch-like fan-in uniform)."""
    keys = jax.random.split(key, 12)

    def uinit(k, shape, fan_in):
        bound = 1.0 / np.sqrt(fan_in)
        return jax.random.uniform(k, shape, jnp.float32, -bound, bound)

    p = {}
    p["w1"] = uinit(keys[0], (3, 3, in_dim, hidden_dim), in_dim * 9)        # HWIO
    p["b1"] = uinit(keys[1], (1, hidden_dim), in_dim * 9)
    p["w2"] = uinit(keys[2], (3, 3, hidden_dim, hidden_dim), hidden_dim * 9)
    p["b2"] = uinit(keys[3], (1, hidden_dim), hidden_dim * 9)
    p["w_score"] = uinit(keys[4], (hidden_dim, 1), hidden_dim)
    p["b_score"] = uinit(keys[5], (1, 1), hidden_dim)
    p["w_box"]   = uinit(keys[6], (hidden_dim, 4), hidden_dim)
    p["b_box"]   = uinit(keys[7], (1, 4), hidden_dim)
    p["w_scale"] = uinit(keys[8], (hidden_dim, num_scales), hidden_dim)
    p["b_scale"] = uinit(keys[9], (1, num_scales), hidden_dim)
    p["w_ctx"]   = uinit(keys[10], (hidden_dim, 1), hidden_dim)
    p["b_ctx"]   = uinit(keys[11], (1, 1), hidden_dim)
    return p


def waldo_detection_head_forward(x_nchw, params, num_scales, feature_maps=None):
    """Forward pass.  `feature_maps` is accepted for API parity but unused
    (the PyTorch forward never reads it)."""
    del feature_maps
    B, Cin, H, W = x_nchw.shape
    Hid = params["w1"].shape[-1]
    S = num_scales
    HW = H * W
    Ctot = 1 + 4 + S + 1
    PAD = ((W + 1 + 127) // 128) * 128          # halo >= W+1, 128-aligned
    Lp = HW + 2 * PAD

    # ---- wrapper glue: im2col of the 3x3 conv1 input (layout, not compute) --
    xf = x_nchw.astype(jnp.float32)
    xp = jnp.pad(xf, ((0, 0), (0, 0), (1, 1), (1, 1)))
    patches = [xp[:, :, dy:dy + H, dx:dx + W] for dy in range(3) for dx in range(3)]
    x_im2col = (jnp.concatenate(patches, axis=1)
                .reshape(B, 9 * Cin, HW).astype(jnp.bfloat16))

    # ---- pack weights for the channels-on-sublane layout --------------------
    w1p = params["w1"].transpose(3, 0, 1, 2).reshape(Hid, 9 * Cin).astype(jnp.bfloat16)
    b1 = params["b1"].reshape(Hid, 1).astype(jnp.float32)
    w2p = params["w2"].transpose(3, 0, 1, 2).reshape(Hid, 9 * Hid).astype(jnp.bfloat16)
    b2 = params["b2"].reshape(Hid, 1).astype(jnp.float32)
    wh = jnp.concatenate([params["w_score"].T, params["w_box"].T,
                          params["w_scale"].T, params["w_ctx"].T],
                         axis=0).astype(jnp.bfloat16)           # (Ctot, Hid)
    bh = jnp.concatenate([params["b_score"].reshape(-1), params["b_box"].reshape(-1),
                          params["b_scale"].reshape(-1), params["b_ctx"].reshape(-1)],
                         axis=0).reshape(Ctot, 1).astype(jnp.float32)

    kernel = functools.partial(_detection_head_kernel,
                               H=H, W=W, pad=PAD, num_scales=S)

    def full_spec(a):
        # Constant block index across the batch grid -> the weight tile stays
        # resident in VMEM (no re-DMA between grid steps).
        return pl.BlockSpec(a.shape, lambda b, _n=a.ndim: (0,) * _n)

    in_specs = [pl.BlockSpec((None, 9 * Cin, HW), lambda b: (b, 0, 0)),
                full_spec(w1p), full_spec(b1),
                full_spec(w2p), full_spec(b2),
                full_spec(wh), full_spec(bh)]
    out_specs = pl.BlockSpec((None, Ctot, HW), lambda b: (b, 0, 0))
    out_shape = jax.ShapeDtypeStruct((B, Ctot, HW), jnp.float32)

    # TODO(synk): at B=2 each batch item is one grid step; for larger batches
    # or feature maps on v7x (64 MiB VMEM), re-derive the spatial tiling.
    fused = pl.pallas_call(
        kernel,
        grid=(B,),
        in_specs=in_specs,
        out_specs=out_specs,
        out_shape=out_shape,
        scratch_shapes=[pltpu.VMEM((Hid, Lp), jnp.bfloat16),
                        pltpu.VMEM((9 * Hid, HW), jnp.bfloat16)],
        compiler_params=pltpu.CompilerParams(dimension_semantics=("parallel",)),
    )(x_im2col, w1p, b1, w2p, b2, wh, bh)

    # Split the fused lane-dense output (cheap XLA glue).
    scores = fused[:, 0, :]                                   # (B, H*W)
    boxes = jnp.transpose(fused[:, 1:5, :], (0, 2, 1))        # (B, H*W, 4)
    scales = jnp.transpose(fused[:, 5:5 + S, :], (0, 2, 1))   # (B, H*W, S)
    ctx = fused[:, 5 + S, :]                                  # (B, H*W)
    return {"scores": scores, "boxes": boxes, "scales": scales,
            "context_scores": ctx}


def reference_forward(x_nchw, params):
    """Pure-JAX f32 reference (mirrors the PyTorch forward)."""
    x = jnp.transpose(x_nchw, (0, 2, 3, 1)).astype(jnp.float32)  # NHWC
    dn = jax.lax.conv_dimension_numbers(x.shape, params["w1"].shape,
                                        ("NHWC", "HWIO", "NHWC"))

    def conv3(inp, w, b):
        out = jax.lax.conv_general_dilated(inp, w, (1, 1), ((1, 1), (1, 1)),
                                           dimension_numbers=dn)
        return out + b.reshape(1, 1, 1, -1)

    feat = jax.nn.relu(conv3(x, params["w1"], params["b1"]))
    feat = jax.nn.relu(conv3(feat, params["w2"], params["b2"]))
    B, H, W, Hid = feat.shape
    f = feat.reshape(B, H * W, Hid)
    scores = f @ params["w_score"] + params["b_score"]
    boxes = jax.nn.sigmoid(f @ params["w_box"] + params["b_box"])
    scales = jax.nn.softmax(f @ params["w_scale"] + params["b_scale"], axis=-1)
    ctx = jax.nn.sigmoid(f @ params["w_ctx"] + params["b_ctx"])
    return {
        "scores": scores[..., 0],
        "boxes": boxes,
        "scales": scales,
        "context_scores": ctx[..., 0],
    }


if __name__ == "__main__":
    # Small shapes consistent with the module: B=2, in_dim=4, 16x16 feature
    # map, hidden_dim=32, num_scales=3.
    B, Cin, H, W = 2, 4, 16, 16
    hidden_dim, num_scales = 32, 3

    key = jax.random.PRNGKey(0)
    kx, kp = jax.random.split(key)
    x = jax.random.normal(kx, (B, Cin, H, W), jnp.float32)   # NCHW like PyTorch
    params = init_params(kp, Cin, hidden_dim, num_scales)
    feature_maps = []  # unused by the forward pass

    out = waldo_detection_head_forward(x, params, num_scales, feature_maps)
    out = jax.block_until_ready(out)

    ref = reference_forward(x, params)
    for name in ("scores", "boxes", "scales", "context_scores"):
        np.testing.assert_allclose(np.asarray(out[name]), np.asarray(ref[name]),
                                   rtol=2e-2, atol=2e-2)

    # TODO(synk): post_process (torchvision NMS) is inference-time glue, not
    # part of the forward hot path, and is not implemented here.
    print("KERNEL_OK")
</pallas_src>

<mosaic_0001>
module attributes {stable_mosaic.version = 11 : i64} {
  func.func @_detection_head_kernel(%arg0: i32, %arg1: memref<1x36x256xbf16, #tpu.memory_space<vmem>>, %arg2: memref<32x36xbf16, #tpu.memory_space<vmem>>, %arg3: memref<32x1xf32, #tpu.memory_space<vmem>>, %arg4: memref<32x288xbf16, #tpu.memory_space<vmem>>, %arg5: memref<32x1xf32, #tpu.memory_space<vmem>>, %arg6: memref<9x32xbf16, #tpu.memory_space<vmem>>, %arg7: memref<9x1xf32, #tpu.memory_space<vmem>>, %arg8: memref<1x9x256xf32, #tpu.memory_space<vmem>>, %arg9: memref<32x512xbf16, #tpu.memory_space<vmem>>, %arg10: memref<288x256xbf16, #tpu.memory_space<vmem>>) attributes {dimension_semantics = [#tpu.dimension_semantics<parallel>], iteration_bounds = array<i64: 2>, scalar_prefetch = 0 : i64, scratch_operands = 2 : i64, tpu.core_type = #tpu.core_type<tc>, window_params = [{transform_indices = @transform_0, window_bounds = array<i64: 1, 36, 256>}, {pipeline_mode = #tpu.pipeline_mode<synchronous>, transform_indices = @transform_1, window_bounds = array<i64: 32, 36>}, {pipeline_mode = #tpu.pipeline_mode<synchronous>, transform_indices = @transform_2, window_bounds = array<i64: 32, 1>}, {pipeline_mode = #tpu.pipeline_mode<synchronous>, transform_indices = @transform_3, window_bounds = array<i64: 32, 288>}, {pipeline_mode = #tpu.pipeline_mode<synchronous>, transform_indices = @transform_4, window_bounds = array<i64: 32, 1>}, {pipeline_mode = #tpu.pipeline_mode<synchronous>, transform_indices = @transform_5, window_bounds = array<i64: 9, 32>}, {pipeline_mode = #tpu.pipeline_mode<synchronous>, transform_indices = @transform_6, window_bounds = array<i64: 9, 1>}, {transform_indices = @transform_7, window_bounds = array<i64: 1, 9, 256>}]} {
    %c0 = arith.constant 0 : index
    %c0_0 = arith.constant 0 : index
    %0 = vector.load %arg2[%c0, %c0_0] : memref<32x36xbf16, #tpu.memory_space<vmem>>, vector<32x36xbf16>
    %c0_1 = arith.constant 0 : index
    %c0_2 = arith.constant 0 : index
    %c0_3 = arith.constant 0 : index
    %1 = vector.load %arg1[%c0_1, %c0_2, %c0_3] : memref<1x36x256xbf16, #tpu.memory_space<vmem>>, vector<1x36x256xbf16>
    %2 = vector.shape_cast %1 : vector<1x36x256xbf16> to vector<36x256xbf16>
    %cst = arith.constant dense<0.000000e+00> : vector<32x256xf32>
    %3 = tpu.matmul %0, %2, %cst {dimension_numbers = #tpu.dot_dimension_numbers<[1], [0], [0], [1], [0, 0, 1, 1], [], []>} : vector<32x36xbf16>, vector<36x256xbf16>, vector<32x256xf32> -> vector<32x256xf32>
    %c0_4 = arith.constant 0 : index
    %c0_5 = arith.constant 0 : index
    %4 = vector.load %arg3[%c0_4, %c0_5] : memref<32x1xf32, #tpu.memory_space<vmem>>, vector<32x1xf32>
    %5 = vector.broadcast %4 : vector<32x1xf32> to vector<32x256xf32>
    %6 = arith.addf %3, %5 : vector<32x256xf32>
    %cst_6 = arith.constant 0.000000e+00 : f32
    %7 = vector.broadcast %cst_6 : f32 to vector<32x256xf32>
    %8 = arith.maximumf %6, %7 : vector<32x256xf32>
    %cst_7 = arith.constant 0.000000e+00 : bf16
    %9 = vector.broadcast %cst_7 : bf16 to vector<32x128xbf16>
    %c0_8 = arith.constant 0 : index
    %c0_9 = arith.constant 0 : index
    %10 = vector.load %arg9[%c0_8, %c0_9] : memref<32x512xbf16, #tpu.memory_space<vmem>>, vector<32x128xbf16>
    tpu.vector_store %arg9[%c0_8, %c0_9], %9 {strides = array<i32>} : memref<32x512xbf16, #tpu.memory_space<vmem>>, vector<32x128xbf16>,
    %c0_10 = arith.constant 0 : index
    %c384 = arith.constant 384 : index
    %11 = vector.load %arg9[%c0_10, %c384] : memref<32x512xbf16, #tpu.memory_space<vmem>>, vector<32x128xbf16>
    tpu.vector_store %arg9[%c0_10, %c384], %9 {strides = array<i32>} : memref<32x512xbf16, #tpu.memory_space<vmem>>, vector<32x128xbf16>,
    %12 = arith.truncf %8 : vector<32x256xf32> to vector<32x256xbf16>
    %c0_11 = arith.constant 0 : index
    %c128 = arith.constant 128 : index
    %13 = vector.load %arg9[%c0_11, %c128] : memref<32x512xbf16, #tpu.memory_space<vmem>>, vector<32x256xbf16>
    tpu.vector_store %arg9[%c0_11, %c128], %12 {strides = array<i32>} : memref<32x512xbf16, #tpu.memory_space<vmem>>, vector<32x256xbf16>,
    %c0_12 = arith.constant 0 : index
    %c0_13 = arith.constant 0 : index
    %14 = vector.load %arg9[%c0_12, %c0_13] : memref<32x512xbf16, #tpu.memory_space<vmem>>, vector<32x512xbf16>
    %15 = tpu.iota {dimensions = array<i32: 1>} : vector<1x512xi32>
    %c16_i32 = arith.constant 16 : i32
    %c0_i32 = arith.constant 0 : i32
    %16 = arith.cmpi eq, %c16_i32, %c0_i32 : i32
    %c1_i32 = arith.constant 1 : i32
    %17 = arith.select %16, %c1_i32, %c16_i32 : i32
    %18 = vector.broadcast %17 : i32 to vector<1x512xi32>
    %19 = arith.remsi %15, %18 : vector<1x512xi32>
    %c0_i32_14 = arith.constant 0 : i32
    %20 = vector.broadcast %c0_i32_14 : i32 to vector<1x512xi32>
    %21 = arith.cmpi ne, %19, %20 : vector<1x512xi32>
    %c0_i32_15 = arith.constant 0 : i32
    %22 = vector.broadcast %c0_i32_15 : i32 to vector<1x512xi32>
    %23 = arith.cmpi slt, %19, %22 : vector<1x512xi32>
    %c0_i32_16 = arith.constant 0 : i32
    %24 = arith.cmpi slt, %17, %c0_i32_16 : i32
    %25 = vector.broadcast %24 : i1 to vector<1x512xi1>
    %26 = vector.broadcast %25 : vector<1x512xi1> to vector<1x512xi1>
    %27 = arith.xori %23, %26 : vector<1x512xi1>
    %28 = arith.andi %27, %21 : vector<1x512xi1>
    %29 = vector.broadcast %17 : i32 to vector<1x512xi32>
    %30 = arith.addi %19, %29 : vector<1x512xi32>
    %31 = arith.select %28, %30, %19 : vector<1x512xi1>, vector<1x512xi32>
    %c15_i32 = arith.constant 15 : i32
    %32 = vector.broadcast %c15_i32 : i32 to vector<1x512xi32>
    %33 = arith.cmpi ne, %31, %32 : vector<1x512xi32>
    %cst_17 = arith.constant 0.000000e+00 : bf16
    %34 = vector.broadcast %cst_17 : bf16 to vector<32x512xbf16>
    %35 = vector.shape_cast %33 : vector<1x512xi1> to vector<1x512xi1>
    %36 = vector.broadcast %35 : vector<1x512xi1> to vector<32x512xi1>
    %37 = arith.select %36, %14, %34 : vector<32x512xi1>, vector<32x512xbf16>
    %c0_i32_18 = arith.constant 0 : i32
    %38 = vector.broadcast %c0_i32_18 : i32 to vector<1x512xi32>
    %39 = arith.cmpi ne, %31, %38 : vector<1x512xi32>
    %cst_19 = arith.constant 0.000000e+00 : bf16
    %40 = vector.broadcast %cst_19 : bf16 to vector<32x512xbf16>
    %41 = vector.shape_cast %39 : vector<1x512xi1> to vector<1x512xi1>
    %42 = vector.broadcast %41 : vector<1x512xi1> to vector<32x512xi1>
    %43 = arith.select %42, %14, %40 : vector<32x512xi1>, vector<32x512xbf16>
    %44 = vector.extract_strided_slice %37 {offsets = [0, 111], sizes = [32, 256], strides = [1, 1]} : vector<32x512xbf16> to vector<32x256xbf16>
    %c0_20 = arith.constant 0 : index
    %c0_21 = arith.constant 0 : index
    %45 = vector.load %arg10[%c0_20, %c0_21] : memref<288x256xbf16, #tpu.memory_space<vmem>>, vector<32x256xbf16>
    tpu.vector_store %arg10[%c0_20, %c0_21], %44 {strides = array<i32>} : memref<288x256xbf16, #tpu.memory_space<vmem>>, vector<32x256xbf16>,
    %46 = vector.extract_strided_slice %14 {offsets = [0, 112], sizes = [32, 256], strides = [1, 1]} : vector<32x512xbf16> to vector<32x256xbf16>
    %c32 = arith.constant 32 : index
    %c0_22 = arith.constant 0 : index
    %47 = vector.load %arg10[%c32, %c0_22] : memref<288x256xbf16, #tpu.memory_space<vmem>>, vector<32x256xbf16>
    tpu.vector_store %arg10[%c32, %c0_22], %46 {strides = array<i32>} : memref<288x256xbf16, #tpu.memory_space<vmem>>, vector<32x256xbf16>,
    %48 = vector.extract_strided_slice %43 {offsets = [0, 113], sizes = [32, 256], strides = [1, 1]} : vector<32x512xbf16> to vector<32x256xbf16>
    %c64 = arith.constant 64 : index
    %c0_23 = arith.constant 0 : index
    %49 = vector.load %arg10[%c64, %c0_23] : memref<288x256xbf16, #tpu.memory_space<vmem>>, vector<32x256xbf16>
    tpu.vector_store %arg10[%c64, %c0_23], %48 {strides = array<i32>} : memref<288x256xbf16, #tpu.memory_space<vmem>>, vector<32x256xbf16>,
    %50 = vector.extract_strided_slice %37 {offsets = [0, 127], sizes = [32, 256], strides = [1, 1]} : vector<32x512xbf16> to vector<32x256xbf16>
    %c96 = arith.constant 96 : index
    %c0_24 = arith.constant 0 : index
    %51 = vector.load %arg10[%c96, %c0_24] : memref<288x256xbf16, #tpu.memory_space<vmem>>, vector<32x256xbf16>
    tpu.vector_store %arg10[%c96, %c0_24], %50 {strides = array<i32>} : memref<288x256xbf16, #tpu.memory_space<vmem>>, vector<32x256xbf16>,
    %52 = vector.extract_strided_slice %14 {offsets = [0, 128], sizes = [32, 256], strides = [1, 1]} : vector<32x512xbf16> to vector<32x256xbf16>
    %c128_25 = arith.constant 128 : index
    %c0_26 = arith.constant 0 : index
    %53 = vector.load %arg10[%c128_25, %c0_26] : memref<288x256xbf16, #tpu.memory_space<vmem>>, vector<32x256xbf16>
    tpu.vector_store %arg10[%c128_25, %c0_26], %52 {strides = array<i32>} : memref<288x256xbf16, #tpu.memory_space<vmem>>, vector<32x256xbf16>,
    %54 = vector.extract_strided_slice %43 {offsets = [0, 129], sizes = [32, 256], strides = [1, 1]} : vector<32x512xbf16> to vector<32x256xbf16>
    %c160 = arith.constant 160 : index
    %c0_27 = arith.constant 0 : index
    %55 = vector.load %arg10[%c160, %c0_27] : memref<288x256xbf16, #tpu.memory_space<vmem>>, vector<32x256xbf16>
    tpu.vector_store %arg10[%c160, %c0_27], %54 {strides = array<i32>} : memref<288x256xbf16, #tpu.memory_space<vmem>>, vector<32x256xbf16>,
    %56 = vector.extract_strided_slice %37 {offsets = [0, 143], sizes = [32, 256], strides = [1, 1]} : vector<32x512xbf16> to vector<32x256xbf16>
    %c192 = arith.constant 192 : index
    %c0_28 = arith.constant 0 : index
    %57 = vector.load %arg10[%c192, %c0_28] : memref<288x256xbf16, #tpu.memory_space<vmem>>, vector<32x256xbf16>
    tpu.vector_store %arg10[%c192, %c0_28], %56 {strides = array<i32>} : memref<288x256xbf16, #tpu.memory_space<vmem>>, vector<32x256xbf16>,
    %58 = vector.extract_strided_slice %14 {offsets = [0, 144], sizes = [32, 256], strides = [1, 1]} : vector<32x512xbf16> to vector<32x256xbf16>
    %c224 = arith.constant 224 : index
    %c0_29 = arith.constant 0 : index
    %59 = vector.load %arg10[%c224, %c0_29] : memref<288x256xbf16, #tpu.memory_space<vmem>>, vector<32x256xbf16>
    tpu.vector_store %arg10[%c224, %c0_29], %58 {strides = array<i32>} : memref<288x256xbf16, #tpu.memory_space<vmem>>, vector<32x256xbf16>,
    %60 = vector.extract_strided_slice %43 {offsets = [0, 145], sizes = [32, 256], strides = [1, 1]} : vector<32x512xbf16> to vector<32x256xbf16>
    %c256 = arith.constant 256 : index
    %c0_30 = arith.constant 0 : index
    %61 = vector.load %arg10[%c256, %c0_30] : memref<288x256xbf16, #tpu.memory_space<vmem>>, vector<32x256xbf16>
    tpu.vector_store %arg10[%c256, %c0_30], %60 {strides = array<i32>} : memref<288x256xbf16, #tpu.memory_space<vmem>>, vector<32x256xbf16>,
    %c0_31 = arith.constant 0 : index
    %c0_32 = arith.constant 0 : index
    %62 = vector.load %arg4[%c0_31, %c0_32] : memref<32x288xbf16, #tpu.memory_space<vmem>>, vector<32x288xbf16>
    %c0_33 = arith.constant 0 : index
    %c0_34 = arith.constant 0 : index
    %63 = vector.load %arg10[%c0_33, %c0_34] : memref<288x256xbf16, #tpu.memory_space<vmem>>, vector<288x256xbf16>
    %cst_35 = arith.constant dense<0.000000e+00> : vector<32x256xf32>
    %64 = tpu.matmul %62, %63, %cst_35 {dimension_numbers = #tpu.dot_dimension_numbers<[1], [0], [0], [1], [0, 0, 1, 1], [], []>} : vector<32x288xbf16>, vector<288x256xbf16>, vector<32x256xf32> -> vector<32x256xf32>
    %c0_36 = arith.constant 0 : index
    %c0_37 = arith.constant 0 : index
    %65 = vector.load %arg5[%c0_36, %c0_37] : memref<32x1xf32, #tpu.memory_space<vmem>>, vector<32x1xf32>
    %66 = vector.broadcast %65 : vector<32x1xf32> to vector<32x256xf32>
    %67 = arith.addf %64, %66 : vector<32x256xf32>
    %cst_38 = arith.constant 0.000000e+00 : f32
    %68 = vector.broadcast %cst_38 : f32 to vector<32x256xf32>
    %69 = arith.maximumf %67, %68 : vector<32x256xf32>
    %c0_39 = arith.constant 0 : index
    %c0_40 = arith.constant 0 : index
    %70 = vector.load %arg6[%c0_39, %c0_40] : memref<9x32xbf16, #tpu.memory_space<vmem>>, vector<9x32xbf16>
    %71 = arith.truncf %69 : vector<32x256xf32> to vector<32x256xbf16>
    %cst_41 = arith.constant dense<0.000000e+00> : vector<9x256xf32>
    %72 = tpu.matmul %70, %71, %cst_41 {dimension_numbers = #tpu.dot_dimension_numbers<[1], [0], [0], [1], [0, 0, 1, 1], [], []>} : vector<9x32xbf16>, vector<32x256xbf16>, vector<9x256xf32> -> vector<9x256xf32>
    %c0_42 = arith.constant 0 : index
    %c0_43 = arith.constant 0 : index
    %73 = vector.load %arg7[%c0_42, %c0_43] : memref<9x1xf32, #tpu.memory_space<vmem>>, vector<9x1xf32>
    %74 = vector.broadcast %73 : vector<9x1xf32> to vector<9x256xf32>
    %75 = arith.addf %72, %74 : vector<9x256xf32>
    %76 = tpu.iota {dimensions = array<i32: 0>} : vector<9x256xi32>
    %c5_i32 = arith.constant 5 : i32
    %77 = vector.broadcast %c5_i32 : i32 to vector<9x256xi32>
    %78 = arith.cmpi sge, %76, %77 : vector<9x256xi32>
    %c8_i32 = arith.constant 8 : i32
    %79 = vector.broadcast %c8_i32 : i32 to vector<9x256xi32>
    %80 = arith.cmpi slt, %76, %79 : vector<9x256xi32>
    %81 = arith.andi %78, %80 : vector<9x256xi1>
    %c1_i32_44 = arith.constant 1 : i32
    %82 = vector.broadcast %c1_i32_44 : i32 to vector<9x256xi32>
    %83 = arith.cmpi sge, %76, %82 : vector<9x256xi32>
    %c5_i32_45 = arith.constant 5 : i32
    %84 = vector.broadcast %c5_i32_45 : i32 to vector<9x256xi32>
    %85 = arith.cmpi slt, %76, %84 : vector<9x256xi32>
    %86 = arith.andi %83, %85 : vector<9x256xi1>
    %c8_i32_46 = arith.constant 8 : i32
    %87 = vector.broadcast %c8_i32_46 : i32 to vector<9x256xi32>
    %88 = arith.cmpi eq, %76, %87 : vector<9x256xi32>
    %89 = arith.ori %86, %88 : vector<9x256xi1>
    %90 = arith.negf %75 : vector<9x256xf32>
    %91 = math.exp %90 : vector<9x256xf32>
    %cst_47 = arith.constant 1.000000e+00 : f32
    %92 = vector.broadcast %cst_47 : f32 to vector<9x256xf32>
    %93 = arith.addf %92, %91 : vector<9x256xf32>
    %94 = arith.divf %92, %93 : vector<9x256xf32>
    %cst_48 = arith.constant -1.000000e+30 : f32
    %95 = vector.broadcast %cst_48 : f32 to vector<9x256xf32>
    %96 = arith.select %81, %75, %95 : vector<9x256xi1>, vector<9x256xf32>
    %cst_49 = arith.constant dense<0xFF800000> : vector<256xf32>
    %97 = vector.multi_reduction <maximumf>, %96, %cst_49 [0] : vector<9x256xf32> to vector<256xf32>
    %98 = vector.shape_cast %97 : vector<256xf32> to vector<1x256xf32>
    %99 = vector.broadcast %98 : vector<1x256xf32> to vector<9x256xf32>
    %100 = arith.subf %96, %99 : vector<9x256xf32>
    %101 = math.exp %100 : vector<9x256xf32>
    %cst_50 = arith.constant dense<0.000000e+00> : vector<256xf32>
    %102 = vector.multi_reduction <add>, %101, %cst_50 [0] : vector<9x256xf32> to vector<256xf32>
    %103 = vector.shape_cast %102 : vector<256xf32> to vector<1x256xf32>
    %104 = tpu.reciprocal %103 {approx = true} : vector<1x256xf32> -> vector<1x256xf32>
    %105 = vector.broadcast %104 : vector<1x256xf32> to vector<9x256xf32>
    %106 = arith.mulf %101, %105 : vector<9x256xf32>
    %107 = arith.select %89, %94, %75 : vector<9x256xi1>, vector<9x256xf32>
    %108 = arith.select %81, %106, %107 : vector<9x256xi1>, vector<9x256xf32>
    %c0_51 = arith.constant 0 : index
    %c0_52 = arith.constant 0 : index
    %c0_53 = arith.constant 0 : index
    %109 = vector.load %arg8[%c0_51, %c0_52, %c0_53] : memref<1x9x256xf32, #tpu.memory_space<vmem>>, vector<1x9x256xf32>
    %110 = vector.shape_cast %109 : vector<1x9x256xf32> to vector<9x256xf32>
    %111 = vector.shape_cast %108 : vector<9x256xf32> to vector<1x9x256xf32>
    tpu.vector_store %arg8[%c0_51, %c0_52, %c0_53], %111 {strides = array<i32>} : memref<1x9x256xf32, #tpu.memory_space<vmem>>, vector<1x9x256xf32>,
    return
  }
  func.func @transform_0(%arg0: i32) -> (i32, i32, i32) {
    %c0_i32 = arith.constant 0 : i32
    %c0_i32_0 = arith.constant 0 : i32
    %c0_i32_1 = arith.constant 0 : i32
    return %arg0, %c0_i32, %c0_i32_0 : i32, i32, i32
  }
  func.func @transform_1(%arg0: i32) -> (i32, i32) {
    %c0_i32 = arith.constant 0 : i32
    %c0_i32_0 = arith.constant 0 : i32
    %c0_i32_1 = arith.constant 0 : i32
    return %c0_i32, %c0_i32_0 : i32, i32
  }
  func.func @transform_2(%arg0: i32) -> (i32, i32) {
    %c0_i32 = arith.constant 0 : i32
    %c0_i32_0 = arith.constant 0 : i32
    %c0_i32_1 = arith.constant 0 : i32
    return %c0_i32, %c0_i32_0 : i32, i32
  }
  func.func @transform_3(%arg0: i32) -> (i32, i32) {
    %c0_i32 = arith.constant 0 : i32
    %c0_i32_0 = arith.constant 0 : i32
    %c0_i32_1 = arith.constant 0 : i32
    return %c0_i32, %c0_i32_0 : i32, i32
  }
  func.func @transform_4(%arg0: i32) -> (i32, i32) {
    %c0_i32 = arith.constant 0 : i32
    %c0_i32_0 = arith.constant 0 : i32
    %c0_i32_1 = arith.constant 0 : i32
    return %c0_i32, %c0_i32_0 : i32, i32
  }
  func.func @transform_5(%arg0: i32) -> (i32, i32) {
    %c0_i32 = arith.constant 0 : i32
    %c0_i32_0 = arith.constant 0 : i32
    %c0_i32_1 = arith.constant 0 : i32
    return %c0_i32, %c0_i32_0 : i32, i32
  }
  func.func @transform_6(%arg0: i32) -> (i32, i32) {
    %c0_i32 = arith.constant 0 : i32
    %c0_i32_0 = arith.constant 0 : i32
    %c0_i32_1 = arith.constant 0 : i32
    return %c0_i32, %c0_i32_0 : i32, i32
  }
  func.func @transform_7(%arg0: i32) -> (i32, i32, i32) {
    %c0_i32 = arith.constant 0 : i32
    %c0_i32_0 = arith.constant 0 : i32
    %c0_i32_1 = arith.constant 0 : i32
    return %arg0, %c0_i32, %c0_i32_0 : i32, i32, i32
  }
}

</mosaic_0001>

<llo_original>
// kernel: tpu_custom_call.1
$region0: #{tpu_custom_call.1}
  #allocation0 [shape = 'u32[]', space=smem, size = 0x4, offset = 0x4, fixed_abs, tag = 'smem constant byte address 0x4 - core index']
  #allocation1 [shape = 'u32[72,128]{1,0:T(1,128)}', space=vmem, size = 0x9000, scoped, tag = 'internal scratch']
  #allocation2 [shape = 'bf16[32,512]{1,0:T(8,128)(2,1)}', space=vmem, size = 0x8000, scoped, tag = 'scratch operand']
  #allocation3 [shape = 'bf16[288,256]{1,0:T(8,128)(2,1)}', space=vmem, size = 0x24000, scoped, tag = 'scratch operand']
  %s0 = inlined_call_operand.vmem [shape: bf16[2,36,256], index: 0, kind: input, shape index: {}]
  %s1 = inlined_call_operand.vmem [shape: bf16[32,36], index: 1, kind: input, shape index: {}]
  %s2 = inlined_call_operand.vmem [shape: f32[32,1], index: 2, kind: input, shape index: {}]
  %s3 = inlined_call_operand.vmem [shape: bf16[32,288], index: 3, kind: input, shape index: {}]
  %s4 = inlined_call_operand.vmem [shape: f32[32,1], index: 4, kind: input, shape index: {}]
  %s5 = inlined_call_operand.vmem [shape: bf16[9,32], index: 5, kind: input, shape index: {}]
  %s6 = inlined_call_operand.vmem [shape: f32[9,1], index: 6, kind: input, shape index: {}]
  %s7 = inlined_call_operand.vmem [shape: f32[2,9,256], index: 7, kind: output, shape index: {}]
  %s8 = sld [smem:[#allocation0]]
  $region61: #{tpu_custom_call.1} parent=0
    _
  %s10 = ssub.s32 1, %s8
  %s11 = scalar_select 0, %s10, %s8
  loop: start=0, step=1, limit=4
  $region2: #{tpu_custom_call.1} parent=0 // loop_pre_header
    _
  $region3: #{tpu_custom_call.1} parent=0 // loop_header
    %s13 = sphi 0, %s17
    %p14 = scmp.ge.s32.totalorder %s13, 4
    %s23 = sphi 0, %s25
    %s26 = sphi 0, %s23
    %s27 = sphi 0, %s26
    %s43 = sphi 0, %s27
    %s47 = sphi 0, %s47
    %s49 = sphi 0, %s47
    %s50 = sphi 0, %s49
    %s64 = sphi 0, %s50
    %s68 = sphi 0, %s68
    %s70 = sphi 0, %s68
    %s71 = sphi 0, %s70
    %s85 = sphi 0, %s71
    %s89 = sphi 0, %s89
    %s91 = sphi 0, %s89
    %s92 = sphi 0, %s91
    %s106 = sphi 0, %s92
    %s110 = sphi 0, %s110
    %s112 = sphi 0, %s110
    %s113 = sphi 0, %s112
    %s127 = sphi 0, %s113
    %s131 = sphi 0, %s131
    %s133 = sphi 0, %s131
    %s134 = sphi 0, %s133
    %s148 = sphi 0, %s134
    %s152 = sphi 0, %s152
    %s154 = sphi 0, %s152
    %s155 = sphi 0, %s154
    %s169 = sphi 0, %s155
    %s175 = sphi 0, %s177
    %s178 = sphi 0, %s175
    %s179 = sphi 0, %s178
    %s195 = sphi 0, %s179
  $region4: #{tpu_custom_call.1} parent=0 // loop_header_branch
    %16 = sbr.rel (%p14) target = $region8
  $region5: #{tpu_custom_call.1} parent=0 // loop_body
    %s18 = ssub.s32 %s13, 1
    %s19 = ssub.s32 %s13, 2
    %s20 = sadd.s32 %s13, 1
    %s21 = ssub.s32 %s13, %s20
    %p22 = scmp.eq.s32.totalorder %s21, 0
    %s24 = sadd.s32 %s23, 1
    %s25 = scalar_select %p22, %s23, %s24
    %p28 = pneg %p22
    %p29 = scmp.eq.s32.totalorder %s13, 1
    %p30 = por %p28, %p29
    %p31 = scmp.ne.s32.totalorder %s23, %s26
    %p32 = scmp.eq.s32.totalorder %s13, 0
    %p33 = por %p31, %p32
    %p34 = scmp.ne.s32.totalorder %s23, %s26
    %p35 = scmp.eq.s32.totalorder %s18, 1
    %p36 = por %p34, %p35
    %p37 = scmp.ne.s32.totalorder %s26, %s27
    %p38 = scmp.eq.s32.totalorder %s18, 0
    %p39 = por %p37, %p38
    %p40 = scmp.ne.s32.totalorder %s26, %s27
    %p41 = scmp.eq.s32.totalorder %s19, 1
    %p42 = por %p40, %p41
    %p44 = scmp.ne.s32.totalorder %s27, %s43
    %p45 = scmp.eq.s32.totalorder %s19, 0
    %p46 = por %p44, %p45
    %s48 = sadd.s32 %s47, 1
    %p51 = scmp.eq.s32.totalorder %s13, 1
    %p52 = scmp.ne.s32.totalorder %s47, %s49
    %p53 = scmp.eq.s32.totalorder %s13, 0
    %p54 = por %p52, %p53
    %p55 = scmp.ne.s32.totalorder %s47, %s49
    %p56 = scmp.eq.s32.totalorder %s18, 1
    %p57 = por %p55, %p56
    %p58 = scmp.ne.s32.totalorder %s49, %s50
    %p59 = scmp.eq.s32.totalorder %s18, 0
    %p60 = por %p58, %p59
    %p61 = scmp.ne.s32.totalorder %s49, %s50
    %p62 = scmp.eq.s32.totalorder %s19, 1
    %p63 = por %p61, %p62
    %p65 = scmp.ne.s32.totalorder %s50, %s64
    %p66 = scmp.eq.s32.totalorder %s19, 0
    %p67 = por %p65, %p66
    %s69 = sadd.s32 %s68, 1
    %p72 = scmp.eq.s32.totalorder %s13, 1
    %p73 = scmp.ne.s32.totalorder %s68, %s70
    %p74 = scmp.eq.s32.totalorder %s13, 0
    %p75 = por %p73, %p74
    %p76 = scmp.ne.s32.totalorder %s68, %s70
    %p77 = scmp.eq.s32.totalorder %s18, 1
    %p78 = por %p76, %p77
    %p79 = scmp.ne.s32.totalorder %s70, %s71
    %p80 = scmp.eq.s32.totalorder %s18, 0
    %p81 = por %p79, %p80
    %p82 = scmp.ne.s32.totalorder %s70, %s71
    %p83 = scmp.eq.s32.totalorder %s19, 1
    %p84 = por %p82, %p83
    %p86 = scmp.ne.s32.totalorder %s71, %s85
    %p87 = scmp.eq.s32.totalorder %s19, 0
    %p88 = por %p86, %p87
    %s90 = sadd.s32 %s89, 1
    %p93 = scmp.eq.s32.totalorder %s13, 1
    %p94 = scmp.ne.s32.totalorder %s89, %s91
    %p95 = scmp.eq.s32.totalorder %s13, 0
    %p96 = por %p94, %p95
    %p97 = scmp.ne.s32.totalorder %s89, %s91
    %p98 = scmp.eq.s32.totalorder %s18, 1
    %p99 = por %p97, %p98
    %p100 = scmp.ne.s32.totalorder %s91, %s92
    %p101 = scmp.eq.s32.totalorder %s18, 0
    %p102 = por %p100, %p101
    %p103 = scmp.ne.s32.totalorder %s91, %s92
    %p104 = scmp.eq.s32.totalorder %s19, 1
    %p105 = por %p103, %p104
    %p107 = scmp.ne.s32.totalorder %s92, %s106
    %p108 = scmp.eq.s32.totalorder %s19, 0
    %p109 = por %p107, %p108
    %s111 = sadd.s32 %s110, 1
    %p114 = scmp.eq.s32.totalorder %s13, 1
    %p115 = scmp.ne.s32.totalorder %s110, %s112
    %p116 = scmp.eq.s32.totalorder %s13, 0
    %p117 = por %p115, %p116
    %p118 = scmp.ne.s32.totalorder %s110, %s112
    %p119 = scmp.eq.s32.totalorder %s18, 1
    %p120 = por %p118, %p119
    %p121 = scmp.ne.s32.totalorder %s112, %s113
    %p122 = scmp.eq.s32.totalorder %s18, 0
    %p123 = por %p121, %p122
    %p124 = scmp.ne.s32.totalorder %s112, %s113
    %p125 = scmp.eq.s32.totalorder %s19, 1
    %p126 = por %p124, %p125
    %p128 = scmp.ne.s32.totalorder %s113, %s127
    %p129 = scmp.eq.s32.totalorder %s19, 0
    %p130 = por %p128, %p129
    %s132 = sadd.s32 %s131, 1
    %p135 = scmp.eq.s32.totalorder %s13, 1
    %p136 = scmp.ne.s32.totalorder %s131, %s133
    %p137 = scmp.eq.s32.totalorder %s13, 0
    %p138 = por %p136, %p137
    %p139 = scmp.ne.s32.totalorder %s131, %s133
    %p140 = scmp.eq.s32.totalorder %s18, 1
    %p141 = por %p139, %p140
    %p142 = scmp.ne.s32.totalorder %s133, %s134
    %p143 = scmp.eq.s32.totalorder %s18, 0
    %p144 = por %p142, %p143
    %p145 = scmp.ne.s32.totalorder %s133, %s134
    %p146 = scmp.eq.s32.totalorder %s19, 1
    %p147 = por %p145, %p146
    %p149 = scmp.ne.s32.totalorder %s134, %s148
    %p150 = scmp.eq.s32.totalorder %s19, 0
    %p151 = por %p149, %p150
    %s153 = sadd.s32 %s152, 1
    %p156 = scmp.eq.s32.totalorder %s13, 1
    %p157 = scmp.ne.s32.totalorder %s152, %s154
    %p158 = scmp.eq.s32.totalorder %s13, 0
    %p159 = por %p157, %p158
    %p160 = scmp.ne.s32.totalorder %s152, %s154
    %p161 = scmp.eq.s32.totalorder %s18, 1
    %p162 = por %p160, %p161
    %p163 = scmp.ne.s32.totalorder %s154, %s155
    %p164 = scmp.eq.s32.totalorder %s18, 0
    %p165 = por %p163, %p164
    %p166 = scmp.ne.s32.totalorder %s154, %s155
    %p167 = scmp.eq.s32.totalorder %s19, 1
    %p168 = por %p166, %p167
    %p170 = scmp.ne.s32.totalorder %s155, %s169
    %p171 = scmp.eq.s32.totalorder %s19, 0
    %p172 = por %p170, %p171
    %s173 = ssub.s32 %s13, %s20
    %p174 = scmp.eq.s32.totalorder %s173, 0
    %s176 = sadd.s32 %s175, 1
    %s177 = scalar_select %p174, %s175, %s176
    %p180 = pneg %p174
    %p181 = scmp.eq.s32.totalorder %s13, 1
    %p182 = por %p180, %p181
    %p183 = scmp.ne.s32.totalorder %s175, %s178
    %p184 = scmp.eq.s32.totalorder %s13, 0
    %p185 = por %p183, %p184
    %p186 = scmp.ne.s32.totalorder %s175, %s178
    %p187 = scmp.eq.s32.totalorder %s18, 1
    %p188 = por %p186, %p187
    %p189 = scmp.ne.s32.totalorder %s178, %s179
    %p190 = scmp.eq.s32.totalorder %s18, 0
    %p191 = por %p189, %p190
    %p192 = scmp.ne.s32.totalorder %s178, %s179
    %p193 = scmp.eq.s32.totalorder %s19, 1
    %p194 = por %p192, %p193
    %p196 = scmp.ne.s32.totalorder %s179, %s195
    %p197 = scmp.eq.s32.totalorder %s19, 0
    %p198 = por %p196, %p197
    %p199 = scmp.le.s32.totalorder 1, %s13
    %p200 = scmp.lt.s32.totalorder %s13, 3
    %p201 = pnand %p199, %p200
    %p202 = pneg %p201
    // Predicated region
    $region9: #{tpu_custom_call.1} parent=5 // pred_check
      _
    $region10: #{tpu_custom_call.1} parent=5 // pred_check_branch
      %204 = sbr.rel (%p201) target = $region12
    $region11: #{tpu_custom_call.1} parent=5 // pred_region
      %s205 = ssub.s32 %s13, 1
      // Predicated region
      $region13: #{tpu_custom_call.1} parent=11 // pred_check
        %p206 = pneg %p60
      $region14: #{tpu_custom_call.1} parent=11 // pred_check_branch
        %208 = sbr.rel (%p206) target = $region16
      $region15: #{tpu_custom_call.1} parent=11 // pred_region
        _
      $region16: #{tpu_custom_call.1} parent=11 // pred_fallthru
        _
      // Predicated region
      $region17: #{tpu_custom_call.1} parent=11 // pred_check
        %p209 = pneg %p81
      $region18: #{tpu_custom_call.1} parent=11 // pred_check_branch
        %211 = sbr.rel (%p209) target = $region20
      $region19: #{tpu_custom_call.1} parent=11 // pred_region
        _
      $region20: #{tpu_custom_call.1} parent=11 // pred_fallthru
        _
      // Predicated region
      $region21: #{tpu_custom_call.1} parent=11 // pred_check
        %p212 = pneg %p102
      $region22: #{tpu_custom_call.1} parent=11 // pred_check_branch
        %214 = sbr.rel (%p212) target = $region24
      $region23: #{tpu_custom_call.1} parent=11 // pred_region
        _
      $region24: #{tpu_custom_call.1} parent=11 // pred_fallthru
        _
      // Predicated region
      $region25: #{tpu_custom_call.1} parent=11 // pred_check
        %p215 = pneg %p123
      $region26: #{tpu_custom_call.1} parent=11 // pred_check_branch
        %217 = sbr.rel (%p215) target = $region28
      $region27: #{tpu_custom_call.1} parent=11 // pred_region
        _
      $region28: #{tpu_custom_call.1} parent=11 // pred_fallthru
        _
      // Predicated region
      $region29: #{tpu_custom_call.1} parent=11 // pred_check
        %p218 = pneg %p144
      $region30: #{tpu_custom_call.1} parent=11 // pred_check_branch
        %220 = sbr.rel (%p218) target = $region32
      $region31: #{tpu_custom_call.1} parent=11 // pred_region
        _
      $region32: #{tpu_custom_call.1} parent=11 // pred_fallthru
        _
      // Predicated region
      $region33: #{tpu_custom_call.1} parent=11 // pred_check
        %p221 = pneg %p165
      $region34: #{tpu_custom_call.1} parent=11 // pred_check_branch
        %223 = sbr.rel (%p221) target = $region36
      $region35: #{tpu_custom_call.1} parent=11 // pred_region
        _
      $region36: #{tpu_custom_call.1} parent=11 // pred_fallthru
        _
    $region12: #{tpu_custom_call.1} parent=5 // pred_fallthru
      _
    %p224 = scmp.lt.s32.totalorder %s13, 2
    // Predicated region
    $region37: #{tpu_custom_call.1} parent=5 // pred_check
      %p225 = pneg %p224
    $region38: #{tpu_custom_call.1} parent=5 // pred_check_branch
      %227 = sbr.rel (%p225) target = $region40
    $region39: #{tpu_custom_call.1} parent=5 // pred_region
      // Predicated region
      $region41: #{tpu_custom_call.1} parent=39 // pred_check
        %p228 = pneg %p33
      $region42: #{tpu_custom_call.1} parent=39 // pred_check_branch
        %230 = sbr.rel (%p228) target = $region44
      $region43: #{tpu_custom_call.1} parent=39 // pred_region
        %p231 = scmp.lt.s32.totalorder %s13, 1
        %s232 = scalar_select %p231, %s13, 1
        %s233 = smul.addr %s232, 10
        %s234 = smul.addr %s233, 4
        %s235 = scalar_lea.vmem %s0, %s234
      $region44: #{tpu_custom_call.1} parent=39 // pred_fallthru
        _
    $region40: #{tpu_custom_call.1} parent=5 // pred_fallthru
      _
    %p236 = scmp.le.s32.totalorder 1, %s13
    %p237 = scmp.lt.s32.totalorder %s13, 3
    %p238 = pnand %p236, %p237
    %p239 = pneg %p238
    // Predicated region
    $region45: #{tpu_custom_call.1} parent=5 // pred_check
      _
    $region46: #{tpu_custom_call.1} parent=5 // pred_check_branch
      %241 = sbr.rel (%p238) target = $region48
    $region47: #{tpu_custom_call.1} parent=5 // pred_region
      %s242 = ssub.s32 %s13, 1
      %p243 = scmp.lt.s32.totalorder %s18, 1
      %s244 = scalar_select %p243, %s18, 1
      %s245 = smul.addr %s244, 10
      %s246 = smul.addr %s245, 4
      %s247 = scalar_lea.vmem %s0, %s246
      %p248 = pneg %p39
      %p249 = pneg %p36
      %p250 = pneg %p60
      %p251 = pneg %p57
      %p252 = pneg %p81
      %p253 = pneg %p78
      %p254 = pneg %p102
      %p255 = pneg %p99
      %p256 = pneg %p123
      %p257 = pneg %p120
      %p258 = pneg %p144
      %p259 = pneg %p141
      %p260 = pneg %p165
      %p261 = pneg %p162
      %p262 = pneg %p191
      %p263 = pneg %p188
      %p264 = scmp.lt.s32.totalorder %s18, 1
      %s265 = scalar_select %p264, %s18, 1
      %s266 = smul.addr %s265, 4
      %s267 = smul.addr %s266, 8
      %s268 = scalar_lea.vmem %s7, %s267
      %p269 = scmp.lt.s32.totalorder %s18, 1
      %s270 = scalar_select %p269, %s18, 1
      %s271 = smul.addr %s270, 10
      %s272 = smul.addr %s271, 4
      %s273 = scalar_lea.vmem %s0, %s272
      %p274 = scmp.lt.s32.totalorder %s18, 1
      %s275 = scalar_select %p274, %s18, 1
      %s276 = smul.addr %s275, 4
      %s277 = smul.addr %s276, 8
      %s278 = scalar_lea.vmem %s7, %s277
      %v280 = vld [vmem:[%s1] sm:$0xf]
      %v281 = vld [vmem:[%s1 + $0x4] sm:$0xf]
      %v282 = vld [vmem:[%s1 + $0x8] sm:$0xf]
      %v283 = vld [vmem:[%s1 + $0xc] sm:$0xf]
      %v284 = vld [vmem:[%s273] sm:$0xff]
      %v285 = vld [vmem:[%s273 + $0x8] sm:$0xff]
      %v286 = vld [vmem:[%s273 + $0x10] sm:$0xff]
      %v287 = vld [vmem:[%s273 + $0x18] sm:$0xff]
      %v288 = vld [vmem:[%s273 + $0x20] sm:$0x33]
      %v289 = vld [vmem:[%s2] sm:$0xff]
      %v290 = vld [vmem:[%s2 + $0x8] sm:$0xff]
      %v291 = vld [vmem:[%s2 + $0x10] sm:$0xff]
      %v292 = vld [vmem:[%s2 + $0x18] sm:$0xff]
      %294 = vset.pattern.permute.xlu0 0
      %295 = vperm.xlu0 %294, %v289
      %v296 = vpop.permute.xlu0 %295
      %299 = vset.pattern.permute.xlu0 0
      %300 = vperm.xlu0 %299, %v290
      %v301 = vpop.permute.xlu0 %300
      %304 = vset.pattern.permute.xlu0 0
      %305 = vperm.xlu0 %304, %v291
      %v306 = vpop.permute.xlu0 %305
      %309 = vset.pattern.permute.xlu0 0
      %310 = vperm.xlu0 %309, %v292
      %v311 = vpop.permute.xlu0 %310
      %v317 = vunpack.c.l.b16 %v280
      %v318 = vunpack.c.l.b16 %v281
      %v319 = vunpack.c.l.b16 %v282
      %v320 = vunpack.c.l.b16 %v283
      %v321 = vpack.c.b16 %v318, %v317
      %v322 = vpack.c.b16 %v320, %v319
      %v328 = vunpack.c.l.b16 %v284
      %v329 = vunpack.c.h.b16 %v284
      %v330 = vunpack.c.l.b16 %v285
      %v331 = vunpack.c.h.b16 %v285
      %v332 = vunpack.c.l.b16 %v286
      %v333 = vunpack.c.h.b16 %v286
      %v334 = vunpack.c.l.b16 %v287
      %v335 = vunpack.c.h.b16 %v287
      %v336 = vunpack.c.l.b16 %v288
      %v337 = vunpack.c.h.b16 %v288
      %v338 = vpack.c.b16 %v330, %v328
      %v339 = vpack.c.b16 %v331, %v329
      %v340 = vpack.c.b16 %v334, %v332
      %v341 = vpack.c.b16 %v335, %v333
      %v342 = vpack.c.b16 %v336, %v336
      %v343 = vpack.c.b16 %v337, %v337
      %vm348 = vcmask 293888
      %v350 = vsel %vm348, %v321, 0
      %v353 = vsel %vm348, %v322, 0
      %vm355 = vcmask 1041408
      %v357 = vsel %vm355, %v342, 0
      %v360 = vsel %vm355, %v343, 0
      %362 = vmatpush.bf16.msra.mxu0 0
      %363 = vmatpush.bf16.msra.mxu0 0
      %364 = vmatpush.bf16.msra.mxu0 0
      %365 = vmatpush.bf16.msra.mxu0 0
      %366 = vmatpush.bf16.msra.mxu0 0
      %367 = vmatpush.bf16.msra.mxu0 %v357
      %368 = vmatpush.bf16.msra.mxu0 %v340
      %369 = vmatpush.bf16.msra.mxu0 %v338
      %370 = vmatmul.bf16.gmra.mxu0 %v350
      %v371 = vpop.f32.mrf.mxu0
      %v372 = vadd.f32 %v296, %v371
      %v373 = vpop.f32.mrf.mxu0
      %v374 = vadd.f32 %v301, %v373
      %375 = vmatmul.bf16.gmra.mxu0 %v353
      %v376 = vpop.f32.mrf.mxu0
      %v377 = vadd.f32 %v306, %v376
      %v378 = vpop.f32.mrf.mxu0
      %v379 = vadd.f32 %v311, %v378
      %380 = vdwg.mxu0
      %381 = vmatpush.bf16.msra.mxu0 0
      %382 = vmatpush.bf16.msra.mxu0 0
      %383 = vmatpush.bf16.msra.mxu0 0
      %384 = vmatpush.bf16.msra.mxu0 0
      %385 = vmatpush.bf16.msra.mxu0 0
      %386 = vmatpush.bf16.msra.mxu0 %v360
      %387 = vmatpush.bf16.msra.mxu0 %v341
      %388 = vmatpush.bf16.msra.mxu0 %v339
      %389 = vmatmul.bf16.gmra.mxu0 %v350
      %v390 = vpop.f32.mrf.mxu0
      %v391 = vadd.f32 %v296, %v390
      %v392 = vpop.f32.mrf.mxu0
      %v393 = vadd.f32 %v301, %v392
      %394 = vmatmul.bf16.gmra.mxu0 %v353
      %v395 = vpop.f32.mrf.mxu0
      %v396 = vadd.f32 %v306, %v395
      %v397 = vpop.f32.mrf.mxu0
      %v398 = vadd.f32 %v311, %v397
      %399 = vdwg.mxu0
      %v400 = vmax.f32 %v372, 0.0
      %v401 = vmax.f32 %v391, 0.0
      %v402 = vmax.f32 %v374, 0.0
      %v403 = vmax.f32 %v393, 0.0
      %v404 = vmax.f32 %v377, 0.0
      %v405 = vmax.f32 %v396, 0.0
      %v406 = vmax.f32 %v379, 0.0
      %v407 = vmax.f32 %v398, 0.0
      %408 = vst [vmem:[#allocation2] sm:$0xf] 0
      %409 = vst [vmem:[#allocation2 + $0x10] sm:$0xf] 0
      %410 = vst [vmem:[#allocation2 + $0x20] sm:$0xf] 0
      %411 = vst [vmem:[#allocation2 + $0x30] sm:$0xf] 0
      %412 = vst [vmem:[#allocation2 + $0xc] sm:$0xf] 0
      %413 = vst [vmem:[#allocation2 + $0x1c] sm:$0xf] 0
      %414 = vst [vmem:[#allocation2 + $0x2c] sm:$0xf] 0
      %415 = vst [vmem:[#allocation2 + $0x3c] sm:$0xf] 0
      %v416 = vpack.c.bf16 %v401, %v400
      %v417 = vpack.c.bf16 %v403, %v402
      %v418 = vpack.c.bf16 %v405, %v404
      %v419 = vpack.c.bf16 %v407, %v406
      %420 = vst [vmem:[#allocation2 + $0x4] sm:$0xff] %v416
      %421 = vst [vmem:[#allocation2 + $0x14] sm:$0xff] %v417
      %422 = vst [vmem:[#allocation2 + $0x24] sm:$0xff] %v418
      %423 = vst [vmem:[#allocation2 + $0x34] sm:$0xff] %v419
      %v424 = vld [vmem:[#allocation2] sm:$0xff]
      %v425 = vld [vmem:[#allocation2 + $0x8] sm:$0xff]
      %v426 = vld [vmem:[#allocation2 + $0x10] sm:$0xff]
      %v427 = vld [vmem:[#allocation2 + $0x18] sm:$0xff]
      %v428 = vld [vmem:[#allocation2 + $0x20] sm:$0xff]
      %v429 = vld [vmem:[#allocation2 + $0x28] sm:$0xff]
      %v430 = vld [vmem:[#allocation2 + $0x30] sm:$0xff]
      %v431 = vld [vmem:[#allocation2 + $0x38] sm:$0xff]
      %v432 = vlaneseq
      %v433 = vand.u32 %v432, 127
      %v434 = vadd.s32 %v433, 128
      %v435 = vadd.s32 %v433, 256
      %v436 = vadd.s32 %v433, 384
      %vm437 = vcmp.lt.s32.totalorder %v433, 0
      %v438 = vsub.s32 0, %v433
      %v439 = vsel %vm437, %v438, %v433
      %v440 = vshrl.u32 %v439, 4
      %v441 = vand.u32 %v439, 15
      %v442 = vsub.s32 0, %v441
      %v443 = vsel %vm437, %v442, %v441
      %vm444 = vcmp.lt.s32.totalorder %v434, 0
      %v445 = vsub.s32 0, %v434
      %v446 = vsel %vm444, %v445, %v434
      %v447 = vshrl.u32 %v446, 4
      %v448 = vand.u32 %v446, 15
      %v449 = vsub.s32 0, %v448
      %v450 = vsel %vm444, %v449, %v448
      %vm451 = vcmp.lt.s32.totalorder %v435, 0
      %v452 = vsub.s32 0, %v435
      %v453 = vsel %vm451, %v452, %v435
      %v454 = vshrl.u32 %v453, 4
      %v455 = vand.u32 %v453, 15
      %v456 = vsub.s32 0, %v455
      %v457 = vsel %vm451, %v456, %v455
      %vm458 = vcmp.lt.s32.totalorder %v436, 0
      %v459 = vsub.s32 0, %v436
      %v460 = vsel %vm458, %v459, %v436
      %v461 = vshrl.u32 %v460, 4
      %v462 = vand.u32 %v460, 15
      %v463 = vsub.s32 0, %v462
      %v464 = vsel %vm458, %v463, %v462
      %vm465 = vcmp.ne.s32.totalorder %v443, 0
      %vm466 = vcmp.ne.s32.totalorder %v450, 0
      %vm467 = vcmp.ne.s32.totalorder %v457, 0
      %vm468 = vcmp.ne.s32.totalorder %v464, 0
      %vm469 = vcmp.lt.s32.totalorder %v443, 0
      %vm470 = vcmp.lt.s32.totalorder %v450, 0
      %vm471 = vcmp.lt.s32.totalorder %v457, 0
      %vm472 = vcmp.lt.s32.totalorder %v464, 0
      %vm473 = vmand %vm469, %vm465
      %vm474 = vmand %vm470, %vm466
      %vm475 = vmand %vm471, %vm467
      %vm476 = vmand %vm472, %vm468
      %v477 = vadd.s32 %v443, 16
      %v478 = vadd.s32 %v450, 16
      %v479 = vadd.s32 %v457, 16
      %v480 = vadd.s32 %v464, 16
      %v481 = vsel %vm473, %v477, %v443
      %v482 = vsel %vm474, %v478, %v450
      %v483 = vsel %vm475, %v479, %v457
      %v484 = vsel %vm476, %v480, %v464
      %vm485 = vcmp.ne.s32.totalorder %v481, 15
      %vm486 = vcmp.ne.s32.totalorder %v482, 15
      %vm487 = vcmp.ne.s32.totalorder %v483, 15
      %vm488 = vcmp.ne.s32.totalorder %v484, 15
      %v489 = vsel %vm485, 1, 0
      %v490 = vsel %vm486, 1, 0
      %v491 = vsel %vm487, 1, 0
      %v492 = vsel %vm488, 1, 0
      %vm493 = vcmp.eq.s32.totalorder %v489, 1
      %vm494 = vcmp.eq.s32.totalorder %v490, 1
      %vm495 = vcmp.eq.s32.totalorder %v491, 1
      %vm496 = vcmp.eq.s32.totalorder %v492, 1
      %vm497 = vmpackc.low %vm494, %vm493
      %vm498 = vmpackc.low %vm496, %vm495
      %v499 = vsel %vm497, %v424, 0
      %v500 = vsel %vm498, %v425, 0
      %v501 = vsel %vm497, %v426, 0
      %v502 = vsel %vm498, %v427, 0
      %v503 = vsel %vm497, %v428, 0
      %v504 = vsel %vm498, %v429, 0
      %v505 = vsel %vm497, %v430, 0
      %v506 = vsel %vm498, %v431, 0
      %vm507 = vcmp.ne.s32.totalorder %v481, 0
      %vm508 = vcmp.ne.s32.totalorder %v482, 0
      %vm509 = vcmp.ne.s32.totalorder %v483, 0
      %vm510 = vcmp.ne.s32.totalorder %v484, 0
      %v511 = vsel %vm507, 1, 0
      %v512 = vsel %vm508, 1, 0
      %v513 = vsel %vm509, 1, 0
      %v514 = vsel %vm510, 1, 0
      %vm515 = vcmp.eq.s32.totalorder %v511, 1
      %vm516 = vcmp.eq.s32.totalorder %v512, 1
      %vm517 = vcmp.eq.s32.totalorder %v513, 1
      %vm518 = vcmp.eq.s32.totalorder %v514, 1
      %vm519 = vmpackc.low %vm516, %vm515
      %vm520 = vmpackc.low %vm518, %vm517
      %v521 = vsel %vm519, %v424, 0
      %v522 = vsel %vm520, %v425, 0
      %v523 = vsel %vm519, %v426, 0
      %v524 = vsel %vm520, %v427, 0
      %v525 = vsel %vm519, %v428, 0
      %v526 = vsel %vm520, %v429, 0
      %v527 = vsel %vm519, %v430, 0
      %v528 = vsel %vm520, %v431, 0
      %537 = vrot.lane.b32.xlu0 %v499, 17
      %v538 = vpop.permute.xlu0 %537
      %539 = vrot.lane.b32.xlu0 %v500, 17
      %v540 = vpop.permute.xlu0 %539
      %541 = vrot.lane.b32.xlu0 %v501, 17
      %v542 = vpop.permute.xlu0 %541
      %543 = vrot.lane.b32.xlu0 %v502, 17
      %v544 = vpop.permute.xlu0 %543
      %545 = vrot.lane.b32.xlu0 %v503, 17
      %v546 = vpop.permute.xlu0 %545
      %547 = vrot.lane.b32.xlu0 %v504, 17
      %v548 = vpop.permute.xlu0 %547
      %549 = vrot.lane.b32.xlu0 %v505, 17
      %v550 = vpop.permute.xlu0 %549
      %551 = vrot.lane.b32.xlu0 %v506, 17
      %v552 = vpop.permute.xlu0 %551
      %v553 = vrot.slane %v538, 4
      %v554 = vrot.slane %v540, 4
      %v555 = vrot.slane %v542, 4
      %v556 = vrot.slane %v544, 4
      %v557 = vrot.slane %v546, 4
      %v558 = vrot.slane %v548, 4
      %v559 = vrot.slane %v550, 4
      %v560 = vrot.slane %v552, 4
      %vm561 = vcmask 1043456
      %v562 = vsel %vm561, %v553, %v554
      %vm563 = vcmask 138240
      %v564 = vsel %vm563, %v538, %v562
      %v565 = vsel %vm561, %v555, %v556
      %v566 = vsel %vm563, %v542, %v565
      %v567 = vsel %vm561, %v557, %v558
      %v568 = vsel %vm563, %v546, %v567
      %v569 = vsel %vm561, %v559, %v560
      %v570 = vsel %vm563, %v550, %v569
      %575 = vst [vmem:[#allocation3] sm:$0xff] %v564
      %576 = vst [vmem:[#allocation3 + $0x8] sm:$0xff] %v566
      %577 = vst [vmem:[#allocation3 + $0x10] sm:$0xff] %v568
      %578 = vst [vmem:[#allocation3 + $0x18] sm:$0xff] %v570
      %587 = vrot.lane.b32.xlu0 %v424, 16
      %v588 = vpop.permute.xlu0 %587
      %589 = vrot.lane.b32.xlu0 %v425, 16
      %v590 = vpop.permute.xlu0 %589
      %591 = vrot.lane.b32.xlu0 %v426, 16
      %v592 = vpop.permute.xlu0 %591
      %593 = vrot.lane.b32.xlu0 %v427, 16
      %v594 = vpop.permute.xlu0 %593
      %595 = vrot.lane.b32.xlu0 %v428, 16
      %v596 = vpop.permute.xlu0 %595
      %597 = vrot.lane.b32.xlu0 %v429, 16
      %v598 = vpop.permute.xlu0 %597
      %599 = vrot.lane.b32.xlu0 %v430, 16
      %v600 = vpop.permute.xlu0 %599
      %601 = vrot.lane.b32.xlu0 %v431, 16
      %v602 = vpop.permute.xlu0 %601
      %v603 = vrot.slane %v588, 4
      %v604 = vrot.slane %v590, 4
      %v605 = vrot.slane %v592, 4
      %v606 = vrot.slane %v594, 4
      %v607 = vrot.slane %v596, 4
      %v608 = vrot.slane %v598, 4
      %v609 = vrot.slane %v600, 4
      %v610 = vrot.slane %v602, 4
      %v611 = vsel %vm561, %v603, %v604
      %vm612 = vcmask 130048
      %v613 = vsel %vm612, %v588, %v611
      %v614 = vsel %vm561, %v605, %v606
      %v615 = vsel %vm612, %v592, %v614
      %v616 = vsel %vm561, %v607, %v608
      %v617 = vsel %vm612, %v596, %v616
      %v618 = vsel %vm561, %v609, %v610
      %v619 = vsel %vm612, %v600, %v618
      %624 = vst [vmem:[#allocation3 + $0x20] sm:$0xff] %v613
      %625 = vst [vmem:[#allocation3 + $0x28] sm:$0xff] %v615
      %626 = vst [vmem:[#allocation3 + $0x30] sm:$0xff] %v617
      %627 = vst [vmem:[#allocation3 + $0x38] sm:$0xff] %v619
      %636 = vrot.lane.b32.xlu0 %v521, 15
      %v637 = vpop.permute.xlu0 %636
      %638 = vrot.lane.b32.xlu0 %v522, 15
      %v639 = vpop.permute.xlu0 %638
      %640 = vrot.lane.b32.xlu0 %v523, 15
      %v641 = vpop.permute.xlu0 %640
      %642 = vrot.lane.b32.xlu0 %v524, 15
      %v643 = vpop.permute.xlu0 %642
      %644 = vrot.lane.b32.xlu0 %v525, 15
      %v645 = vpop.permute.xlu0 %644
      %646 = vrot.lane.b32.xlu0 %v526, 15
      %v647 = vpop.permute.xlu0 %646
      %648 = vrot.lane.b32.xlu0 %v527, 15
      %v649 = vpop.permute.xlu0 %648
      %650 = vrot.lane.b32.xlu0 %v528, 15
      %v651 = vpop.permute.xlu0 %650
      %v652 = vrot.slane %v637, 4
      %v653 = vrot.slane %v639, 4
      %v654 = vrot.slane %v641, 4
      %v655 = vrot.slane %v643, 4
      %v656 = vrot.slane %v645, 4
      %v657 = vrot.slane %v647, 4
      %v658 = vrot.slane %v649, 4
      %v659 = vrot.slane %v651, 4
      %v660 = vsel %vm561, %v652, %v653
      %vm661 = vcmask 121856
      %v662 = vsel %vm661, %v637, %v660
      %v663 = vsel %vm561, %v654, %v655
      %v664 = vsel %vm661, %v641, %v663
      %v665 = vsel %vm561, %v656, %v657
      %v666 = vsel %vm661, %v645, %v665
      %v667 = vsel %vm561, %v658, %v659
      %v668 = vsel %vm661, %v649, %v667
      %673 = vst [vmem:[#allocation3 + $0x40] sm:$0xff] %v662
      %674 = vst [vmem:[#allocation3 + $0x48] sm:$0xff] %v664
      %675 = vst [vmem:[#allocation3 + $0x50] sm:$0xff] %v666
      %676 = vst [vmem:[#allocation3 + $0x58] sm:$0xff] %v668
      %677 = vrot.lane.b32.xlu0 %v499, 1
      %v678 = vpop.permute.xlu0 %677
      %679 = vrot.lane.b32.xlu0 %v500, 1
      %v680 = vpop.permute.xlu0 %679
      %681 = vrot.lane.b32.xlu0 %v501, 1
      %v682 = vpop.permute.xlu0 %681
      %683 = vrot.lane.b32.xlu0 %v502, 1
      %v684 = vpop.permute.xlu0 %683
      %685 = vrot.lane.b32.xlu0 %v503, 1
      %v686 = vpop.permute.xlu0 %685
      %687 = vrot.lane.b32.xlu0 %v504, 1
      %v688 = vpop.permute.xlu0 %687
      %689 = vrot.lane.b32.xlu0 %v505, 1
      %v690 = vpop.permute.xlu0 %689
      %691 = vrot.lane.b32.xlu0 %v506, 1
      %v692 = vpop.permute.xlu0 %691
      %v693 = vrot.slane %v678, 4
      %v694 = vrot.slane %v680, 4
      %v695 = vrot.slane %v682, 4
      %v696 = vrot.slane %v684, 4
      %v697 = vrot.slane %v686, 4
      %v698 = vrot.slane %v688, 4
      %v699 = vrot.slane %v690, 4
      %v700 = vrot.slane %v692, 4
      %v701 = vsel %vm561, %v693, %v694
      %vm702 = vcmask 7168
      %v703 = vsel %vm702, %v678, %v701
      %v704 = vsel %vm561, %v695, %v696
      %v705 = vsel %vm702, %v682, %v704
      %v706 = vsel %vm561, %v697, %v698
      %v707 = vsel %vm702, %v686, %v706
      %v708 = vsel %vm561, %v699, %v700
      %v709 = vsel %vm702, %v690, %v708
      %714 = vst [vmem:[#allocation3 + $0x60] sm:$0xff] %v703
      %715 = vst [vmem:[#allocation3 + $0x68] sm:$0xff] %v705
      %716 = vst [vmem:[#allocation3 + $0x70] sm:$0xff] %v707
      %717 = vst [vmem:[#allocation3 + $0x78] sm:$0xff] %v709
      %v718 = vrot.slane %v424, 4
      %v719 = vrot.slane %v425, 4
      %v720 = vrot.slane %v426, 4
      %v721 = vrot.slane %v427, 4
      %v722 = vrot.slane %v428, 4
      %v723 = vrot.slane %v429, 4
      %v724 = vrot.slane %v430, 4
      %v725 = vrot.slane %v431, 4
      %v726 = vsel %vm561, %v718, %v719
      %v727 = vsel %vm561, %v720, %v721
      %v728 = vsel %vm561, %v722, %v723
      %v729 = vsel %vm561, %v724, %v725
      %734 = vst [vmem:[#allocation3 + $0x80] sm:$0xff] %v726
      %735 = vst [vmem:[#allocation3 + $0x88] sm:$0xff] %v727
      %736 = vst [vmem:[#allocation3 + $0x90] sm:$0xff] %v728
      %737 = vst [vmem:[#allocation3 + $0x98] sm:$0xff] %v729
      %738 = vrot.lane.b32.xlu0 %v521, 127
      %v739 = vpop.permute.xlu0 %738
      %740 = vrot.lane.b32.xlu0 %v522, 127
      %v741 = vpop.permute.xlu0 %740
      %742 = vrot.lane.b32.xlu0 %v523, 127
      %v743 = vpop.permute.xlu0 %742
      %744 = vrot.lane.b32.xlu0 %v524, 127
      %v745 = vpop.permute.xlu0 %744
      %746 = vrot.lane.b32.xlu0 %v525, 127
      %v747 = vpop.permute.xlu0 %746
      %748 = vrot.lane.b32.xlu0 %v526, 127
      %v749 = vpop.permute.xlu0 %748
      %750 = vrot.lane.b32.xlu0 %v527, 127
      %v751 = vpop.permute.xlu0 %750
      %752 = vrot.lane.b32.xlu0 %v528, 127
      %v753 = vpop.permute.xlu0 %752
      %v754 = vrot.slane %v739, 4
      %v755 = vrot.slane %v741, 4
      %v756 = vrot.slane %v743, 4
      %v757 = vrot.slane %v745, 4
      %v758 = vrot.slane %v747, 4
      %v759 = vrot.slane %v749, 4
      %v760 = vrot.slane %v751, 4
      %v761 = vrot.slane %v753, 4
      %v762 = vsel %vm561, %v754, %v755
      %vm763 = vcmask 1039360
      %v764 = vsel %vm763, %v762, %v741
      %v765 = vsel %vm561, %v756, %v757
      %v766 = vsel %vm763, %v765, %v745
      %v767 = vsel %vm561, %v758, %v759
      %v768 = vsel %vm763, %v767, %v749
      %v769 = vsel %vm561, %v760, %v761
      %v770 = vsel %vm763, %v769, %v753
      %775 = vst [vmem:[#allocation3 + $0xa0] sm:$0xff] %v764
      %776 = vst [vmem:[#allocation3 + $0xa8] sm:$0xff] %v766
      %777 = vst [vmem:[#allocation3 + $0xb0] sm:$0xff] %v768
      %778 = vst [vmem:[#allocation3 + $0xb8] sm:$0xff] %v770
      %779 = vrot.lane.b32.xlu0 %v499, 113
      %v780 = vpop.permute.xlu0 %779
      %781 = vrot.lane.b32.xlu0 %v500, 113
      %v782 = vpop.permute.xlu0 %781
      %783 = vrot.lane.b32.xlu0 %v501, 113
      %v784 = vpop.permute.xlu0 %783
      %785 = vrot.lane.b32.xlu0 %v502, 113
      %v786 = vpop.permute.xlu0 %785
      %787 = vrot.lane.b32.xlu0 %v503, 113
      %v788 = vpop.permute.xlu0 %787
      %789 = vrot.lane.b32.xlu0 %v504, 113
      %v790 = vpop.permute.xlu0 %789
      %791 = vrot.lane.b32.xlu0 %v505, 113
      %v792 = vpop.permute.xlu0 %791
      %793 = vrot.lane.b32.xlu0 %v506, 113
      %v794 = vpop.permute.xlu0 %793
      %v795 = vrot.slane %v780, 4
      %v796 = vrot.slane %v782, 4
      %v797 = vrot.slane %v784, 4
      %v798 = vrot.slane %v786, 4
      %v799 = vrot.slane %v788, 4
      %v800 = vrot.slane %v790, 4
      %v801 = vrot.slane %v792, 4
      %v802 = vrot.slane %v794, 4
      %v803 = vsel %vm561, %v795, %v796
      %vm804 = vcmask 924672
      %v805 = vsel %vm804, %v803, %v782
      %v806 = vsel %vm561, %v797, %v798
      %v807 = vsel %vm804, %v806, %v786
      %v808 = vsel %vm561, %v799, %v800
      %v809 = vsel %vm804, %v808, %v790
      %v810 = vsel %vm561, %v801, %v802
      %v811 = vsel %vm804, %v810, %v794
      %816 = vst [vmem:[#allocation3 + $0xc0] sm:$0xff] %v805
      %817 = vst [vmem:[#allocation3 + $0xc8] sm:$0xff] %v807
      %818 = vst [vmem:[#allocation3 + $0xd0] sm:$0xff] %v809
      %819 = vst [vmem:[#allocation3 + $0xd8] sm:$0xff] %v811
      %820 = vrot.lane.b32.xlu0 %v424, 112
      %v821 = vpop.permute.xlu0 %820
      %822 = vrot.lane.b32.xlu0 %v425, 112
      %v823 = vpop.permute.xlu0 %822
      %824 = vrot.lane.b32.xlu0 %v426, 112
      %v825 = vpop.permute.xlu0 %824
      %826 = vrot.lane.b32.xlu0 %v427, 112
      %v827 = vpop.permute.xlu0 %826
      %828 = vrot.lane.b32.xlu0 %v428, 112
      %v829 = vpop.permute.xlu0 %828
      %830 = vrot.lane.b32.xlu0 %v429, 112
      %v831 = vpop.permute.xlu0 %830
      %832 = vrot.lane.b32.xlu0 %v430, 112
      %v833 = vpop.permute.xlu0 %832
      %834 = vrot.lane.b32.xlu0 %v431, 112
      %v835 = vpop.permute.xlu0 %834
      %v836 = vrot.slane %v821, 4
      %v837 = vrot.slane %v823, 4
      %v838 = vrot.slane %v825, 4
      %v839 = vrot.slane %v827, 4
      %v840 = vrot.slane %v829, 4
      %v841 = vrot.slane %v831, 4
      %v842 = vrot.slane %v833, 4
      %v843 = vrot.slane %v835, 4
      %v844 = vsel %vm561, %v836, %v837
      %vm845 = vcmask 916480
      %v846 = vsel %vm845, %v844, %v823
      %v847 = vsel %vm561, %v838, %v839
      %v848 = vsel %vm845, %v847, %v827
      %v849 = vsel %vm561, %v840, %v841
      %v850 = vsel %vm845, %v849, %v831
      %v851 = vsel %vm561, %v842, %v843
      %v852 = vsel %vm845, %v851, %v835
      %857 = vst [vmem:[#allocation3 + $0xe0] sm:$0xff] %v846
      %858 = vst [vmem:[#allocation3 + $0xe8] sm:$0xff] %v848
      %859 = vst [vmem:[#allocation3 + $0xf0] sm:$0xff] %v850
      %860 = vst [vmem:[#allocation3 + $0xf8] sm:$0xff] %v852
      %861 = vrot.lane.b32.xlu0 %v521, 111
      %v862 = vpop.permute.xlu0 %861
      %863 = vrot.lane.b32.xlu0 %v522, 111
      %v864 = vpop.permute.xlu0 %863
      %865 = vrot.lane.b32.xlu0 %v523, 111
      %v866 = vpop.permute.xlu0 %865
      %867 = vrot.lane.b32.xlu0 %v524, 111
      %v868 = vpop.permute.xlu0 %867
      %869 = vrot.lane.b32.xlu0 %v525, 111
      %v870 = vpop.permute.xlu0 %869
      %871 = vrot.lane.b32.xlu0 %v526, 111
      %v872 = vpop.permute.xlu0 %871
      %873 = vrot.lane.b32.xlu0 %v527, 111
      %v874 = vpop.permute.xlu0 %873
      %875 = vrot.lane.b32.xlu0 %v528, 111
      %v876 = vpop.permute.xlu0 %875
      %v877 = vrot.slane %v862, 4
      %v878 = vrot.slane %v864, 4
      %v879 = vrot.slane %v866, 4
      %v880 = vrot.slane %v868, 4
      %v881 = vrot.slane %v870, 4
      %v882 = vrot.slane %v872, 4
      %v883 = vrot.slane %v874, 4
      %v884 = vrot.slane %v876, 4
      %v885 = vsel %vm561, %v877, %v878
      %vm886 = vcmask 908288
      %v887 = vsel %vm886, %v885, %v864
      %v888 = vsel %vm561, %v879, %v880
      %v889 = vsel %vm886, %v888, %v868
      %v890 = vsel %vm561, %v881, %v882
      %v891 = vsel %vm886, %v890, %v872
      %v892 = vsel %vm561, %v883, %v884
      %v893 = vsel %vm886, %v892, %v876
      %898 = vst [vmem:[#allocation3 + $0x100] sm:$0xff] %v887
      %899 = vst [vmem:[#allocation3 + $0x108] sm:$0xff] %v889
      %900 = vst [vmem:[#allocation3 + $0x110] sm:$0xff] %v891
      %901 = vst [vmem:[#allocation3 + $0x118] sm:$0xff] %v893
      %v902 = vld [vmem:[%s3] sm:$0xff]
      %v903 = vld [vmem:[%s3 + $0x8] sm:$0xf]
      %v904 = vld [vmem:[%s3 + $0xc] sm:$0xff]
      %v905 = vld [vmem:[%s3 + $0x14] sm:$0xf]
      %v906 = vld [vmem:[%s3 + $0x18] sm:$0xff]
      %v907 = vld [vmem:[%s3 + $0x20] sm:$0xf]
      %v908 = vld [vmem:[%s3 + $0x24] sm:$0xff]
      %v909 = vld [vmem:[%s3 + $0x2c] sm:$0xf]
      %v910 = vld [vmem:[#allocation3] sm:$0xff]
      %v911 = vld [vmem:[#allocation3 + $0x8] sm:$0xff]
      %v912 = vld [vmem:[#allocation3 + $0x10] sm:$0xff]
      %v913 = vld [vmem:[#allocation3 + $0x18] sm:$0xff]
      %v914 = vld [vmem:[#allocation3 + $0x20] sm:$0xff]
      %v915 = vld [vmem:[#allocation3 + $0x28] sm:$0xff]
      %v916 = vld [vmem:[#allocation3 + $0x30] sm:$0xff]
      %v917 = vld [vmem:[#allocation3 + $0x38] sm:$0xff]
      %v918 = vld [vmem:[#allocation3 + $0x40] sm:$0xff]
      %v919 = vld [vmem:[#allocation3 + $0x48] sm:$0xff]
      %v920 = vld [vmem:[#allocation3 + $0x50] sm:$0xff]
      %v921 = vld [vmem:[#allocation3 + $0x58] sm:$0xff]
      %v922 = vld [vmem:[#allocation3 + $0x60] sm:$0xff]
      %v923 = vld [vmem:[#allocation3 + $0x68] sm:$0xff]
      %v924 = vld [vmem:[#allocation3 + $0x70] sm:$0xff]
      %v925 = vld [vmem:[#allocation3 + $0x78] sm:$0xff]
      %v926 = vld [vmem:[#allocation3 + $0x80] sm:$0xff]
      %v927 = vld [vmem:[#allocation3 + $0x88] sm:$0xff]
      %v928 = vld [vmem:[#allocation3 + $0x90] sm:$0xff]
      %v929 = vld [vmem:[#allocation3 + $0x98] sm:$0xff]
      %v930 = vld [vmem:[#allocation3 + $0xa0] sm:$0xff]
      %v931 = vld [vmem:[#allocation3 + $0xa8] sm:$0xff]
      %v932 = vld [vmem:[#allocation3 + $0xb0] sm:$0xff]
      %v933 = vld [vmem:[#allocation3 + $0xb8] sm:$0xff]
      %v934 = vld [vmem:[#allocation3 + $0xc0] sm:$0xff]
      %v935 = vld [vmem:[#allocation3 + $0xc8] sm:$0xff]
      %v936 = vld [vmem:[#allocation3 + $0xd0] sm:$0xff]
      %v937 = vld [vmem:[#allocation3 + $0xd8] sm:$0xff]
      %v938 = vld [vmem:[#allocation3 + $0xe0] sm:$0xff]
      %v939 = vld [vmem:[#allocation3 + $0xe8] sm:$0xff]
      %v940 = vld [vmem:[#allocation3 + $0xf0] sm:$0xff]
      %v941 = vld [vmem:[#allocation3 + $0xf8] sm:$0xff]
      %v942 = vld [vmem:[#allocation3 + $0x100] sm:$0xff]
      %v943 = vld [vmem:[#allocation3 + $0x108] sm:$0xff]
      %v944 = vld [vmem:[#allocation3 + $0x110] sm:$0xff]
      %v945 = vld [vmem:[#allocation3 + $0x118] sm:$0xff]
      %v946 = vld [vmem:[%s4] sm:$0xff]
      %v947 = vld [vmem:[%s4 + $0x8] sm:$0xff]
      %v948 = vld [vmem:[%s4 + $0x10] sm:$0xff]
      %v949 = vld [vmem:[%s4 + $0x18] sm:$0xff]
      %951 = vset.pattern.permute.xlu0 0
      %952 = vperm.xlu0 %951, %v946
      %v953 = vpop.permute.xlu0 %952
      %956 = vset.pattern.permute.xlu0 0
      %957 = vperm.xlu0 %956, %v947
      %v958 = vpop.permute.xlu0 %957
      %961 = vset.pattern.permute.xlu0 0
      %962 = vperm.xlu0 %961, %v948
      %v963 = vpop.permute.xlu0 %962
      %966 = vset.pattern.permute.xlu0 0
      %967 = vperm.xlu0 %966, %v949
      %v968 = vpop.permute.xlu0 %967
      %v978 = vunpack.c.l.b16 %v902
      %v979 = vunpack.c.h.b16 %v902
      %v980 = vunpack.c.l.b16 %v903
      %v981 = vunpack.c.l.b16 %v904
      %v982 = vunpack.c.h.b16 %v904
      %v983 = vunpack.c.l.b16 %v905
      %v984 = vunpack.c.l.b16 %v906
      %v985 = vunpack.c.h.b16 %v906
      %v986 = vunpack.c.l.b16 %v907
      %v987 = vunpack.c.l.b16 %v908
      %v988 = vunpack.c.h.b16 %v908
      %v989 = vunpack.c.l.b16 %v909
      %v990 = vpack.c.b16 %v981, %v978
      %v991 = vpack.c.b16 %v982, %v979
      %v992 = vpack.c.b16 %v983, %v980
      %v993 = vpack.c.b16 %v987, %v984
      %v994 = vpack.c.b16 %v988, %v985
      %v995 = vpack.c.b16 %v989, %v986
      %v1036 = vunpack.c.l.b16 %v910
      %v1037 = vunpack.c.h.b16 %v910
      %v1038 = vunpack.c.l.b16 %v911
      %v1039 = vunpack.c.h.b16 %v911
      %v1040 = vunpack.c.l.b16 %v912
      %v1041 = vunpack.c.h.b16 %v912
      %v1042 = vunpack.c.l.b16 %v913
      %v1043 = vunpack.c.h.b16 %v913
      %v1044 = vunpack.c.l.b16 %v914
      %v1045 = vunpack.c.h.b16 %v914
      %v1046 = vunpack.c.l.b16 %v915
      %v1047 = vunpack.c.h.b16 %v915
      %v1048 = vunpack.c.l.b16 %v916
      %v1049 = vunpack.c.h.b16 %v916
      %v1050 = vunpack.c.l.b16 %v917
      %v1051 = vunpack.c.h.b16 %v917
      %v1052 = vunpack.c.l.b16 %v918
      %v1053 = vunpack.c.h.b16 %v918
      %v1054 = vunpack.c.l.b16 %v919
      %v1055 = vunpack.c.h.b16 %v919
      %v1056 = vunpack.c.l.b16 %v920
      %v1057 = vunpack.c.h.b16 %v920
      %v1058 = vunpack.c.l.b16 %v921
      %v1059 = vunpack.c.h.b16 %v921
      %v1060 = vunpack.c.l.b16 %v922
      %v1061 = vunpack.c.h.b16 %v922
      %v1062 = vunpack.c.l.b16 %v923
      %v1063 = vunpack.c.h.b16 %v923
      %v1064 = vunpack.c.l.b16 %v924
      %v1065 = vunpack.c.h.b16 %v924
      %v1066 = vunpack.c.l.b16 %v925
      %v1067 = vunpack.c.h.b16 %v925
      %v1068 = vunpack.c.l.b16 %v926
      %v1069 = vunpack.c.h.b16 %v926
      %v1070 = vunpack.c.l.b16 %v927
      %v1071 = vunpack.c.h.b16 %v927
      %v1072 = vunpack.c.l.b16 %v928
      %v1073 = vunpack.c.h.b16 %v928
      %v1074 = vunpack.c.l.b16 %v929
      %v1075 = vunpack.c.h.b16 %v929
      %v1076 = vunpack.c.l.b16 %v930
      %v1077 = vunpack.c.h.b16 %v930
      %v1078 = vunpack.c.l.b16 %v931
      %v1079 = vunpack.c.h.b16 %v931
      %v1080 = vunpack.c.l.b16 %v932
      %v1081 = vunpack.c.h.b16 %v932
      %v1082 = vunpack.c.l.b16 %v933
      %v1083 = vunpack.c.h.b16 %v933
      %v1084 = vunpack.c.l.b16 %v934
      %v1085 = vunpack.c.h.b16 %v934
      %v1086 = vunpack.c.l.b16 %v935
      %v1087 = vunpack.c.h.b16 %v935
      %v1088 = vunpack.c.l.b16 %v936
      %v1089 = vunpack.c.h.b16 %v936
      %v1090 = vunpack.c.l.b16 %v937
      %v1091 = vunpack.c.h.b16 %v937
      %v1092 = vunpack.c.l.b16 %v938
      %v1093 = vunpack.c.h.b16 %v938
      %v1094 = vunpack.c.l.b16 %v939
      %v1095 = vunpack.c.h.b16 %v939
      %v1096 = vunpack.c.l.b16 %v940
      %v1097 = vunpack.c.h.b16 %v940
      %v1098 = vunpack.c.l.b16 %v941
      %v1099 = vunpack.c.h.b16 %v941
      %v1100 = vunpack.c.l.b16 %v942
      %v1101 = vunpack.c.h.b16 %v942
      %v1102 = vunpack.c.l.b16 %v943
      %v1103 = vunpack.c.h.b16 %v943
      %v1104 = vunpack.c.l.b16 %v944
      %v1105 = vunpack.c.h.b16 %v944
      %v1106 = vunpack.c.l.b16 %v945
      %v1107 = vunpack.c.h.b16 %v945
      %v1108 = vpack.c.b16 %v1038, %v1036
      %v1109 = vpack.c.b16 %v1039, %v1037
      %v1110 = vpack.c.b16 %v1042, %v1040
      %v1111 = vpack.c.b16 %v1043, %v1041
      %v1112 = vpack.c.b16 %v1046, %v1044
      %v1113 = vpack.c.b16 %v1047, %v1045
      %v1114 = vpack.c.b16 %v1050, %v1048
      %v1115 = vpack.c.b16 %v1051, %v1049
      %v1116 = vpack.c.b16 %v1054, %v1052
      %v1117 = vpack.c.b16 %v1055, %v1053
      %v1118 = vpack.c.b16 %v1058, %v1056
      %v1119 = vpack.c.b16 %v1059, %v1057
      %v1120 = vpack.c.b16 %v1062, %v1060
      %v1121 = vpack.c.b16 %v1063, %v1061
      %v1122 = vpack.c.b16 %v1066, %v1064
      %v1123 = vpack.c.b16 %v1067, %v1065
      %v1124 = vpack.c.b16 %v1070, %v1068
      %v1125 = vpack.c.b16 %v1071, %v1069
      %v1126 = vpack.c.b16 %v1074, %v1072
      %v1127 = vpack.c.b16 %v1075, %v1073
      %v1128 = vpack.c.b16 %v1078, %v1076
      %v1129 = vpack.c.b16 %v1079, %v1077
      %v1130 = vpack.c.b16 %v1082, %v1080
      %v1131 = vpack.c.b16 %v1083, %v1081
      %v1132 = vpack.c.b16 %v1086, %v1084
      %v1133 = vpack.c.b16 %v1087, %v1085
      %v1134 = vpack.c.b16 %v1090, %v1088
      %v1135 = vpack.c.b16 %v1091, %v1089
      %v1136 = vpack.c.b16 %v1094, %v1092
      %v1137 = vpack.c.b16 %v1095, %v1093
      %v1138 = vpack.c.b16 %v1098, %v1096
      %v1139 = vpack.c.b16 %v1099, %v1097
      %v1140 = vpack.c.b16 %v1102, %v1100
      %v1141 = vpack.c.b16 %v1103, %v1101
      %v1142 = vpack.c.b16 %v1106, %v1104
      %v1143 = vpack.c.b16 %v1107, %v1105
      %vm1180 = vcmask 261120
      %v1182 = vsel %vm1180, %v992, 0
      %v1185 = vsel %vm1180, %v995, 0
      %1187 = vmatpush.bf16.msra.mxu0 %v1122
      %1188 = vmatpush.bf16.msra.mxu0 %v1120
      %1189 = vmatpush.bf16.msra.mxu0 %v1118
      %1190 = vmatpush.bf16.msra.mxu0 %v1116
      %1191 = vmatpush.bf16.msra.mxu0 %v1114
      %1192 = vmatpush.bf16.msra.mxu0 %v1112
      %1193 = vmatpush.bf16.msra.mxu0 %v1110
      %1194 = vmatpush.bf16.msra.mxu0 %v1108
      %1195 = vmatmul.bf16.gmra.mxu0 %v990
      %v1196 = vpop.f32.mrf.mxu0
      %v1197 = vadd.f32 %v953, %v1196
      %v1198 = vpop.f32.mrf.mxu0
      %v1199 = vadd.f32 %v958, %v1198
      %1200 = vmatmul.bf16.gmra.mxu0 %v993
      %v1201 = vpop.f32.mrf.mxu0
      %v1202 = vadd.f32 %v963, %v1201
      %v1203 = vpop.f32.mrf.mxu0
      %v1204 = vadd.f32 %v968, %v1203
      %1205 = vdwg.mxu0
      %1206 = vmatpush.bf16.msra.mxu0 %v1138
      %1207 = vmatpush.bf16.msra.mxu0 %v1136
      %1208 = vmatpush.bf16.msra.mxu0 %v1134
      %1209 = vmatpush.bf16.msra.mxu0 %v1132
      %1210 = vmatpush.bf16.msra.mxu0 %v1130
      %1211 = vmatpush.bf16.msra.mxu0 %v1128
      %1212 = vmatpush.bf16.msra.mxu0 %v1126
      %1213 = vmatpush.bf16.msra.mxu0 %v1124
      %1214 = vmatmul.bf16.gmra.mxu0 %v991
      %v1215 = vpop.f32.mrf.mxu0
      %v1216 = vadd.f32 %v1197, %v1215
      %v1217 = vpop.f32.mrf.mxu0
      %v1218 = vadd.f32 %v1199, %v1217
      %1219 = vmatmul.bf16.gmra.mxu0 %v994
      %v1220 = vpop.f32.mrf.mxu0
      %v1221 = vadd.f32 %v1202, %v1220
      %v1222 = vpop.f32.mrf.mxu0
      %v1223 = vadd.f32 %v1204, %v1222
      %1224 = vdwg.mxu0
      %1225 = vmatpush.bf16.msra.mxu0 0
      %1226 = vmatpush.bf16.msra.mxu0 0
      %1227 = vmatpush.bf16.msra.mxu0 0
      %1228 = vmatpush.bf16.msra.mxu0 0
      %1229 = vmatpush.bf16.msra.mxu0 0
      %1230 = vmatpush.bf16.msra.mxu0 0
      %1231 = vmatpush.bf16.msra.mxu0 %v1142
      %1232 = vmatpush.bf16.msra.mxu0 %v1140
      %1233 = vmatmul.bf16.gmra.mxu0 %v1182
      %v1234 = vpop.f32.mrf.mxu0
      %v1235 = vadd.f32 %v1216, %v1234
      %v1236 = vpop.f32.mrf.mxu0
      %v1237 = vadd.f32 %v1218, %v1236
      %1238 = vmatmul.bf16.gmra.mxu0 %v1185
      %v1239 = vpop.f32.mrf.mxu0
      %v1240 = vadd.f32 %v1221, %v1239
      %v1241 = vpop.f32.mrf.mxu0
      %v1242 = vadd.f32 %v1223, %v1241
      %1243 = vdwg.mxu0
      %1244 = vmatpush.bf16.msra.mxu0 %v1123
      %1245 = vmatpush.bf16.msra.mxu0 %v1121
      %1246 = vmatpush.bf16.msra.mxu0 %v1119
      %1247 = vmatpush.bf16.msra.mxu0 %v1117
      %1248 = vmatpush.bf16.msra.mxu0 %v1115
      %1249 = vmatpush.bf16.msra.mxu0 %v1113
      %1250 = vmatpush.bf16.msra.mxu0 %v1111
      %1251 = vmatpush.bf16.msra.mxu0 %v1109
      %1252 = vmatmul.bf16.gmra.mxu0 %v990
      %v1253 = vpop.f32.mrf.mxu0
      %v1254 = vadd.f32 %v953, %v1253
      %v1255 = vpop.f32.mrf.mxu0
      %v1256 = vadd.f32 %v958, %v1255
      %1257 = vmatmul.bf16.gmra.mxu0 %v993
      %v1258 = vpop.f32.mrf.mxu0
      %v1259 = vadd.f32 %v963, %v1258
      %v1260 = vpop.f32.mrf.mxu0
      %v1261 = vadd.f32 %v968, %v1260
      %1262 = vdwg.mxu0
      %1263 = vmatpush.bf16.msra.mxu0 %v1139
      %1264 = vmatpush.bf16.msra.mxu0 %v1137
      %1265 = vmatpush.bf16.msra.mxu0 %v1135
      %1266 = vmatpush.bf16.msra.mxu0 %v1133
      %1267 = vmatpush.bf16.msra.mxu0 %v1131
      %1268 = vmatpush.bf16.msra.mxu0 %v1129
      %1269 = vmatpush.bf16.msra.mxu0 %v1127
      %1270 = vmatpush.bf16.msra.mxu0 %v1125
      %1271 = vmatmul.bf16.gmra.mxu0 %v991
      %v1272 = vpop.f32.mrf.mxu0
      %v1273 = vadd.f32 %v1254, %v1272
      %v1274 = vpop.f32.mrf.mxu0
      %v1275 = vadd.f32 %v1256, %v1274
      %1276 = vmatmul.bf16.gmra.mxu0 %v994
      %v1277 = vpop.f32.mrf.mxu0
      %v1278 = vadd.f32 %v1259, %v1277
      %v1279 = vpop.f32.mrf.mxu0
      %v1280 = vadd.f32 %v1261, %v1279
      %1281 = vdwg.mxu0
      %1282 = vmatpush.bf16.msra.mxu0 0
      %1283 = vmatpush.bf16.msra.mxu0 0
      %1284 = vmatpush.bf16.msra.mxu0 0
      %1285 = vmatpush.bf16.msra.mxu0 0
      %1286 = vmatpush.bf16.msra.mxu0 0
      %1287 = vmatpush.bf16.msra.mxu0 0
      %1288 = vmatpush.bf16.msra.mxu0 %v1143
      %1289 = vmatpush.bf16.msra.mxu0 %v1141
      %1290 = vmatmul.bf16.gmra.mxu0 %v1182
      %v1291 = vpop.f32.mrf.mxu0
      %v1292 = vadd.f32 %v1273, %v1291
      %v1293 = vpop.f32.mrf.mxu0
      %v1294 = vadd.f32 %v1275, %v1293
      %1295 = vmatmul.bf16.gmra.mxu0 %v1185
      %v1296 = vpop.f32.mrf.mxu0
      %v1297 = vadd.f32 %v1278, %v1296
      %v1298 = vpop.f32.mrf.mxu0
      %v1299 = vadd.f32 %v1280, %v1298
      %1300 = vdwg.mxu0
      %v1301 = vmax.f32 %v1235, 0.0
      %v1302 = vmax.f32 %v1292, 0.0
      %v1303 = vmax.f32 %v1237, 0.0
      %v1304 = vmax.f32 %v1294, 0.0
      %v1305 = vmax.f32 %v1240, 0.0
      %v1306 = vmax.f32 %v1297, 0.0
      %v1307 = vmax.f32 %v1242, 0.0
      %v1308 = vmax.f32 %v1299, 0.0
      %v1309 = vld [vmem:[%s5] sm:$0xf]
      %v1310 = vld [vmem:[%s5 + $0x4] sm:$0x1]
      %v1311 = vpack.c.bf16 %v1303, %v1301
      %v1312 = vpack.c.bf16 %v1304, %v1302
      %v1313 = vpack.c.bf16 %v1307, %v1305
      %v1314 = vpack.c.bf16 %v1308, %v1306
      %v1315 = vld [vmem:[%s6] sm:$0xff]
      %v1316 = vld [vmem:[%s6 + $0x8] sm:$0x1]
      %1318 = vset.pattern.permute.xlu0 0
      %1319 = vperm.xlu0 %1318, %v1315
      %v1320 = vpop.permute.xlu0 %1319
      %1323 = vset.pattern.permute.xlu0 0
      %1324 = vperm.xlu0 %1323, %v1316
      %v1325 = vpop.permute.xlu0 %1324
      %v1329 = vunpack.c.l.b16 %v1309
      %v1330 = vunpack.c.l.b16 %v1310
      %v1331 = vpack.c.b16 %v1330, %v1329
      %v1333 = vsel %vm1180, %v1331, 0
      %1335 = vmatpush.bf16.msra.mxu0 0
      %1336 = vmatpush.bf16.msra.mxu0 0
      %1337 = vmatpush.bf16.msra.mxu0 0
      %1338 = vmatpush.bf16.msra.mxu0 0
      %1339 = vmatpush.bf16.msra.mxu0 0
      %1340 = vmatpush.bf16.msra.mxu0 0
      %1341 = vmatpush.bf16.msra.mxu0 %v1313
      %1342 = vmatpush.bf16.msra.mxu0 %v1311
      %1343 = vmatmul.bf16.gmra.mxu0 %v1333
      %v1344 = vpop.f32.mrf.mxu0
      %v1345 = vadd.f32 %v1320, %v1344
      %v1346 = vpop.f32.mrf.mxu0
      %v1347 = vadd.f32 %v1325, %v1346
      %1348 = vdwg.mxu0
      %1349 = vmatpush.bf16.msra.mxu0 0
      %1350 = vmatpush.bf16.msra.mxu0 0
      %1351 = vmatpush.bf16.msra.mxu0 0
      %1352 = vmatpush.bf16.msra.mxu0 0
      %1353 = vmatpush.bf16.msra.mxu0 0
      %1354 = vmatpush.bf16.msra.mxu0 0
      %1355 = vmatpush.bf16.msra.mxu0 %v1314
      %1356 = vmatpush.bf16.msra.mxu0 %v1312
      %1357 = vmatmul.bf16.gmra.mxu0 %v1333
      %v1358 = vpop.f32.mrf.mxu0
      %v1359 = vadd.f32 %v1320, %v1358
      %v1360 = vpop.f32.mrf.mxu0
      %v1361 = vadd.f32 %v1325, %v1360
      %1362 = vdwg.mxu0
      %v1363 = vlaneseq
      %v1364 = vshrl.u32 %v1363, 7
      %v1365 = vadd.s32 %v1364, 8
      %vm1366 = vcmp.ge.s32.totalorder %v1364, 5
      %vm1367 = vcmp.ge.s32.totalorder %v1365, 5
      %vm1368 = vcmp.lt.s32.totalorder %v1364, 8
      %vm1369 = vcmp.lt.s32.totalorder %v1365, 8
      %vm1370 = vmand %vm1366, %vm1368
      %vm1371 = vmand %vm1367, %vm1369
      %vm1372 = vcmp.ge.s32.totalorder %v1364, 1
      %vm1373 = vcmp.ge.s32.totalorder %v1365, 1
      %vm1374 = vcmp.lt.s32.totalorder %v1364, 5
      %vm1375 = vcmp.lt.s32.totalorder %v1365, 5
      %vm1376 = vmand %vm1372, %vm1374
      %vm1377 = vmand %vm1373, %vm1375
      %vm1378 = vcmp.eq.s32.totalorder %v1364, 8
      %vm1379 = vcmp.eq.s32.totalorder %v1365, 8
      %vm1380 = vmor %vm1376, %vm1378
      %vm1381 = vmor %vm1377, %vm1379
      %v1382 = vxor.u32 %v1345, 2147483648
      %v1383 = vxor.u32 %v1359, 2147483648
      %v1384 = vxor.u32 %v1347, 2147483648
      %v1385 = vxor.u32 %v1361, 2147483648
      %v1386 = vmul.f32 %v1382, 1.442695
      %v1387 = vpow.pop %v1386
      %v1388 = vmul.f32 %v1383, 1.442695
      %v1389 = vpow.pop %v1388
      %v1390 = vmul.f32 %v1384, 1.442695
      %v1391 = vpow.pop %v1390
      %v1392 = vmul.f32 %v1385, 1.442695
      %v1393 = vpow.pop %v1392
      %v1394 = vadd.f32 %v1387, 1.0
      %v1395 = vadd.f32 %v1389, 1.0
      %v1396 = vadd.f32 %v1391, 1.0
      %v1397 = vadd.f32 %v1393, 1.0
      %v1398 = vrcp.pop %v1394
      %v1399 = vmul.f32 %v1394, %v1398
      %v1400 = vsub.f32 1.0, %v1399
      %v1401 = vmul.f32 %v1398, %v1400
      %v1402 = vadd.f32 %v1398, %v1401
      %vm1403 = vweird.f32 %v1394
      %vm1404 = vweird.f32 %v1398
      %vm1405 = vmor %vm1403, %vm1404
      %v1406 = vsel %vm1405, %v1398, %v1402
      %v1407 = vand.u32 2147483647, %v1394
      %vm1408 = vcmp.eq.f32.partialorder %v1407, 8.507059e+37
      %v1409 = vand.u32 %v1394, 2147483648
      %v1410 = vor.u32 1.1754944e-38, %v1409
      %v1411 = vsel %vm1408, %v1410, %v1406
      %v1412 = vmul.f32 1.0, %v1411
      %v1413 = vrcp.pop %v1395
      %v1414 = vmul.f32 %v1395, %v1413
      %v1415 = vsub.f32 1.0, %v1414
      %v1416 = vmul.f32 %v1413, %v1415
      %v1417 = vadd.f32 %v1413, %v1416
      %vm1418 = vweird.f32 %v1395
      %vm1419 = vweird.f32 %v1413
      %vm1420 = vmor %vm1418, %vm1419
      %v1421 = vsel %vm1420, %v1413, %v1417
      %v1422 = vand.u32 2147483647, %v1395
      %vm1423 = vcmp.eq.f32.partialorder %v1422, 8.507059e+37
      %v1424 = vand.u32 %v1395, 2147483648
      %v1425 = vor.u32 1.1754944e-38, %v1424
      %v1426 = vsel %vm1423, %v1425, %v1421
      %v1427 = vmul.f32 1.0, %v1426
      %v1428 = vrcp.pop %v1396
      %v1429 = vmul.f32 %v1396, %v1428
      %v1430 = vsub.f32 1.0, %v1429
      %v1431 = vmul.f32 %v1428, %v1430
      %v1432 = vadd.f32 %v1428, %v1431
      %vm1433 = vweird.f32 %v1396
      %vm1434 = vweird.f32 %v1428
      %vm1435 = vmor %vm1433, %vm1434
      %v1436 = vsel %vm1435, %v1428, %v1432
      %v1437 = vand.u32 2147483647, %v1396
      %vm1438 = vcmp.eq.f32.partialorder %v1437, 8.507059e+37
      %v1439 = vand.u32 %v1396, 2147483648
      %v1440 = vor.u32 1.1754944e-38, %v1439
      %v1441 = vsel %vm1438, %v1440, %v1436
      %v1442 = vmul.f32 1.0, %v1441
      %v1443 = vrcp.pop %v1397
      %v1444 = vmul.f32 %v1397, %v1443
      %v1445 = vsub.f32 1.0, %v1444
      %v1446 = vmul.f32 %v1443, %v1445
      %v1447 = vadd.f32 %v1443, %v1446
      %vm1448 = vweird.f32 %v1397
      %vm1449 = vweird.f32 %v1443
      %vm1450 = vmor %vm1448, %vm1449
      %v1451 = vsel %vm1450, %v1443, %v1447
      %v1452 = vand.u32 2147483647, %v1397
      %vm1453 = vcmp.eq.f32.partialorder %v1452, 8.507059e+37
      %v1454 = vand.u32 %v1397, 2147483648
      %v1455 = vor.u32 1.1754944e-38, %v1454
      %v1456 = vsel %vm1453, %v1455, %v1451
      %v1457 = vmul.f32 1.0, %v1456
      %v1458 = vsel %vm1370, %v1345, -1e+30
      %v1459 = vsel %vm1370, %v1359, -1e+30
      %v1460 = vsel %vm1371, %v1347, -1e+30
      %v1461 = vsel %vm1371, %v1361, -1e+30
      %vm1462 = vcmask 1040384
      %v1463 = vsel %vm1462, %v1460, -inf
      %v1464 = vmax.f32 %v1458, %v1463
      %v1465 = vrot.slane %v1464, 4
      %v1466 = vmax.f32 %v1464, %v1465
      %v1467 = vrot.slane %v1466, 2
      %v1468 = vmax.f32 %v1466, %v1467
      %v1469 = vrot.slane %v1468, 1
      %v1470 = vmax.f32 %v1468, %v1469
      %v1471 = vsel %vm1462, %v1461, -inf
      %v1472 = vmax.f32 %v1459, %v1471
      %v1473 = vrot.slane %v1472, 4
      %v1474 = vmax.f32 %v1472, %v1473
      %v1475 = vrot.slane %v1474, 2
      %v1476 = vmax.f32 %v1474, %v1475
      %v1477 = vrot.slane %v1476, 1
      %v1478 = vmax.f32 %v1476, %v1477
      %v1479 = vsub.f32 %v1458, %v1470
      %v1480 = vsub.f32 %v1459, %v1478
      %v1481 = vsub.f32 %v1460, %v1470
      %v1482 = vsub.f32 %v1461, %v1478
      %v1483 = vmul.f32 %v1479, 1.442695
      %v1484 = vpow.pop %v1483
      %v1485 = vmul.f32 %v1480, 1.442695
      %v1486 = vpow.pop %v1485
      %v1487 = vmul.f32 %v1481, 1.442695
      %v1488 = vpow.pop %v1487
      %v1489 = vmul.f32 %v1482, 1.442695
      %v1490 = vpow.pop %v1489
      %v1491 = vsel %vm1462, %v1488, 0.0
      %v1492 = vadd.f32 %v1484, %v1491
      %v1493 = vrot.slane %v1492, 4
      %v1494 = vadd.f32 %v1492, %v1493
      %v1495 = vrot.slane %v1494, 2
      %v1496 = vadd.f32 %v1494, %v1495
      %v1497 = vrot.slane %v1496, 1
      %v1498 = vadd.f32 %v1496, %v1497
      %v1499 = vsel %vm1462, %v1490, 0.0
      %v1500 = vadd.f32 %v1486, %v1499
      %v1501 = vrot.slane %v1500, 4
      %v1502 = vadd.f32 %v1500, %v1501
      %v1503 = vrot.slane %v1502, 2
      %v1504 = vadd.f32 %v1502, %v1503
      %v1505 = vrot.slane %v1504, 1
      %v1506 = vadd.f32 %v1504, %v1505
      %v1507 = vrcp.pop %v1498
      %v1508 = vrcp.pop %v1506
      %v1509 = vmul.f32 %v1484, %v1507
      %v1510 = vmul.f32 %v1486, %v1508
      %v1511 = vmul.f32 %v1488, %v1507
      %v1512 = vmul.f32 %v1490, %v1508
      %v1513 = vsel %vm1380, %v1412, %v1345
      %v1514 = vsel %vm1380, %v1427, %v1359
      %v1515 = vsel %vm1381, %v1442, %v1347
      %v1516 = vsel %vm1381, %v1457, %v1361
      %v1517 = vsel %vm1370, %v1509, %v1513
      %v1518 = vsel %vm1370, %v1510, %v1514
      %v1519 = vsel %vm1371, %v1511, %v1515
      %v1520 = vsel %vm1371, %v1512, %v1516
      %1521 = vst [vmem:[%s278] sm:$0xff] %v1517
      %1522 = vst [vmem:[%s278 + $0x8] sm:$0xff] %v1518
      %1523 = vst [vmem:[%s278 + $0x10] sm:$0x1] %v1519
      %1524 = vst [vmem:[%s278 + $0x18] sm:$0x1] %v1520
      %p1525 = scmp.lt.s32.totalorder %s18, 1
      %s1526 = scalar_select %p1525, %s18, 1
      %s1527 = smul.addr %s1526, 4
      %s1528 = smul.addr %s1527, 8
      %s1529 = scalar_lea.vmem %s7, %s1528
      // Predicated region
      $region49: #{tpu_custom_call.1} parent=47 // pred_check
        %p1530 = pneg %p188
      $region50: #{tpu_custom_call.1} parent=47 // pred_check_branch
        %1532 = sbr.rel (%p1530) target = $region52
      $region51: #{tpu_custom_call.1} parent=47 // pred_region
        _
      $region52: #{tpu_custom_call.1} parent=47 // pred_fallthru
        _
    $region48: #{tpu_custom_call.1} parent=5 // pred_fallthru
      _
    %p1533 = scmp.le.s32.totalorder 2, %s13
    // Predicated region
    $region53: #{tpu_custom_call.1} parent=5 // pred_check
      %p1534 = pneg %p1533
    $region54: #{tpu_custom_call.1} parent=5 // pred_check_branch
      %1536 = sbr.rel (%p1534) target = $region56
    $region55: #{tpu_custom_call.1} parent=5 // pred_region
      %s1537 = ssub.s32 %s13, 2
      // Predicated region
      $region57: #{tpu_custom_call.1} parent=55 // pred_check
        %p1538 = pneg %p194
      $region58: #{tpu_custom_call.1} parent=55 // pred_check_branch
        %1540 = sbr.rel (%p1538) target = $region60
      $region59: #{tpu_custom_call.1} parent=55 // pred_region
        %p1541 = scmp.lt.s32.totalorder %s19, 1
        %s1542 = scalar_select %p1541, %s19, 1
        %s1543 = smul.addr %s1542, 4
        %s1544 = smul.addr %s1543, 8
        %s1545 = scalar_lea.vmem %s7, %s1544
      $region60: #{tpu_custom_call.1} parent=55 // pred_fallthru
        _
    $region56: #{tpu_custom_call.1} parent=5 // pred_fallthru
      _
  $region6: #{tpu_custom_call.1} parent=0 // loop_footer
    %s17 = sadd.s32 1, %s13
  $region7: #{tpu_custom_call.1} parent=0 // loop_footer_branch
    %12 = sbr.rel target = $region3
  $region8: #{tpu_custom_call.1} parent=0 // loop_exit
    _

</llo_original>
